<compile_context>
chip_gen: v7x
topology: tpu7x:2x2x1
jax: 0.10.0
libtpu: 0.0.40
codegen_flags: <defaults>
</compile_context>

<pallas_src>
import jax
import jax.numpy as jnp
from jax.experimental import pallas as pl
from jax.experimental.pallas import tpu as pltpu


def lka_forward(x_nchw, params):
    """x_nchw: (B, C, H, W) float32; params in PyTorch layouts."""
    w0, b0, ws, bs, w1, b1 = params
    B, C, H, W = x_nchw.shape
    WC = W * C
    f32 = jnp.float32

    # ---------------- wrapper-side layout plumbing (HBM) -------------------
    # lane index = w*C + c
    x_lanes = x_nchw.transpose(0, 2, 3, 1).reshape(B, H, WC).astype(f32)

    def per_lane(w_ck):  # (C, K) -> (K, W*C), row k holds weight[c, k] at lane w*C+c
        K = w_ck.shape[1]
        return jnp.tile(w_ck.T[:, None, :], (1, W, 1)).reshape(K, WC).astype(f32)

    w0_rows = per_lane(w0.reshape(C, 25))            # 5x5 dw,  k = dh*5 + dw
    ws_rows = per_lane(ws.reshape(C, 49))            # 7x7 dw,  k = dh*7 + dw
    b0_row = jnp.tile(b0.astype(f32), W).reshape(1, WC)
    bs_row = jnp.tile(bs.astype(f32), W).reshape(1, WC)
    b1_row = jnp.tile(b1.astype(f32), W).reshape(1, WC)

    # 1x1 conv as 2C-1 lane-shifted multiply-adds: for lane shift d, lane
    # w*C + co carries w1[co, co+d] (zero where co+d falls outside [0, C)).
    w1_mat = w1[:, :, 0, 0].astype(f32)              # (C_out, C_in)
    d_vals = jnp.arange(-(C - 1), C)                 # (2C-1,)
    co = jnp.arange(C)
    ci = co[None, :] + d_vals[:, None]               # (2C-1, C)
    vals = jnp.where((ci >= 0) & (ci < C),
                     w1_mat[jnp.broadcast_to(co[None, :], ci.shape),
                            jnp.clip(ci, 0, C - 1)],
                     0.0)
    w1_rows = jnp.tile(vals[:, None, :], (1, W, 1)).reshape(2 * C - 1, WC)

    pad0_shape = (H + 4, (W + 4) * C)                # 5x5, pad=2
    pad1_shape = (H + 18, (W + 18) * C)              # 7x7 dil=3, pad=9

    # ---------------------------- kernel ------------------------------------
    def kernel(x_ref, w0_ref, b0_ref, ws_ref, bs_ref, w1_ref, b1_ref,
               o_ref, pad0_ref, pad1_ref):
        x = x_ref[0]                                             # (H, WC)

        # stage padded input for the 5x5 conv: 1 full-width interior store
        # (zeros|x|zeros along lanes) + 2 small halo-row stores.
        z2r = jnp.zeros((2, (W + 4) * C), f32)
        z2c = jnp.zeros((H, 2 * C), f32)
        pad0_ref[0:2, :] = z2r
        pad0_ref[H + 2:H + 4, :] = z2r
        pad0_ref[2:H + 2, :] = jnp.concatenate([z2c, x, z2c], axis=1)

        # conv0: 5x5 depthwise, vectorized over channels (lanes = w*C + c).
        acc0 = jnp.broadcast_to(b0_ref[...], (H, WC))
        for k in range(25):
            dh, dw = k // 5, k % 5
            acc0 = acc0 + (pad0_ref[dh:dh + H, dw * C:dw * C + WC]
                           * w0_ref[k:k + 1, :])

        # stage padded input for the 7x7 dilated conv.
        z9r = jnp.zeros((9, (W + 18) * C), f32)
        z9c = jnp.zeros((H, 9 * C), f32)
        pad1_ref[0:9, :] = z9r
        pad1_ref[H + 9:H + 18, :] = z9r
        pad1_ref[9:H + 9, :] = jnp.concatenate([z9c, acc0, z9c], axis=1)

        # conv_spatial: 7x7 depthwise, dilation=3.
        acc1 = jnp.broadcast_to(bs_ref[...], (H, WC))
        for k in range(49):
            dh, dw = k // 7, k % 7
            acc1 = acc1 + (pad1_ref[3 * dh:3 * dh + H,
                                    3 * dw * C:3 * dw * C + WC]
                           * ws_ref[k:k + 1, :])

        # conv1: 1x1 pointwise on the VPU in f32 (no MXU / bf16 at tiny C):
        # channel mixing = 2C-1 lane-shifted multiply-adds.
        zc = jnp.zeros((H, C), f32)
        a2 = jnp.concatenate([zc, acc1, zc], axis=1)             # (H, WC + 2C)
        attn = jnp.broadcast_to(b1_ref[...], (H, WC))
        for idx in range(2 * C - 1):
            d = idx - (C - 1)
            attn = attn + a2[:, C + d:C + d + WC] * w1_ref[idx:idx + 1, :]

        # gate + residual in the native (H, W*C) layout (no relayout reshape).
        o_ref[0] = (x * attn + x).astype(o_ref.dtype)

    # -------------------- VMEM budget ((8,128)-tiled sizes) -----------------
    def tiled_bytes(shape, itemsize=4):
        s = list(shape)
        s[-1] = pl.cdiv(s[-1], 128) * 128
        if len(s) >= 2:
            s[-2] = pl.cdiv(s[-2], 8) * 8
        n = itemsize
        for d in s:
            n *= d
        return n

    weight_arrays = (w0_rows, b0_row, ws_rows, bs_row, w1_rows, b1_row)
    need = (2 * 2 * tiled_bytes((1, H, WC))                      # x + out (double-buffered)
            + 2 * sum(tiled_bytes(w.shape) for w in weight_arrays)
            + tiled_bytes(pad0_shape) + tiled_bytes(pad1_shape))
    # >= default scoped VMEM, with headroom below v7x's 64 MiB per-core VMEM.
    vmem_limit = int(min(max(2 * need + (4 << 20), 32 << 20), 48 << 20))

    wspec = lambda shape: pl.BlockSpec(shape, lambda b: (0, 0))

    out_lanes = pl.pallas_call(
        kernel,
        out_shape=jax.ShapeDtypeStruct((B, H, WC), x_nchw.dtype),
        grid_spec=pltpu.PrefetchScalarGridSpec(
            num_scalar_prefetch=0,
            grid=(B,),                                           # parallel over batch
            in_specs=[
                pl.BlockSpec((1, H, WC), lambda b: (b, 0, 0)),   # x (lane layout)
                wspec(w0_rows.shape), wspec(b0_row.shape),
                wspec(ws_rows.shape), wspec(bs_row.shape),
                wspec(w1_rows.shape), wspec(b1_row.shape),
            ],
            out_specs=pl.BlockSpec((1, H, WC), lambda b: (b, 0, 0)),
            scratch_shapes=[
                pltpu.VMEM(pad0_shape, jnp.float32),
                pltpu.VMEM(pad1_shape, jnp.float32),
            ],
        ),
        compiler_params=pltpu.CompilerParams(
            dimension_semantics=("parallel",),
            vmem_limit_bytes=vmem_limit),
    )(x_lanes, w0_rows, b0_row, ws_rows, bs_row, w1_rows, b1_row)

    # wrapper-side HBM layout plumbing back to NCHW.
    return out_lanes.reshape(B, H, W, C).transpose(0, 3, 1, 2).astype(x_nchw.dtype)


def lka_reference(x_nchw, params):
    """Pure-JAX reference (lax convs), NCHW, matches PyTorch semantics."""
    w0, b0, ws, bs, w1, b1 = params
    C = x_nchw.shape[1]
    dn = ('NCHW', 'OIHW', 'NCHW')
    hp = jax.lax.Precision.HIGHEST
    a = jax.lax.conv_general_dilated(
        x_nchw, w0, (1, 1), [(2, 2), (2, 2)], feature_group_count=C,
        dimension_numbers=dn, precision=hp) + b0.reshape(1, C, 1, 1)
    a = jax.lax.conv_general_dilated(
        a, ws, (1, 1), [(9, 9), (9, 9)], rhs_dilation=(3, 3),
        feature_group_count=C, dimension_numbers=dn,
        precision=hp) + bs.reshape(1, C, 1, 1)
    a = jax.lax.conv_general_dilated(
        a, w1, (1, 1), [(0, 0), (0, 0)], dimension_numbers=dn,
        precision=hp) + b1.reshape(1, C, 1, 1)
    return x_nchw * a + x_nchw


def init_params(key, dim):
    ks = jax.random.split(key, 6)
    w0 = jax.random.normal(ks[0], (dim, 1, 5, 5), jnp.float32) * 0.1   # conv0 (dw)
    b0 = jax.random.normal(ks[1], (dim,), jnp.float32) * 0.1
    ws = jax.random.normal(ks[2], (dim, 1, 7, 7), jnp.float32) * 0.1   # conv_spatial (dw)
    bs = jax.random.normal(ks[3], (dim,), jnp.float32) * 0.1
    w1 = jax.random.normal(ks[4], (dim, dim, 1, 1), jnp.float32) * 0.1  # conv1 (1x1)
    b1 = jax.random.normal(ks[5], (dim,), jnp.float32) * 0.1
    return (w0, b0, ws, bs, w1, b1)


if __name__ == "__main__":
    B, C, H, W = 2, 4, 16, 16
    key = jax.random.PRNGKey(0)
    k_x, k_p = jax.random.split(key)
    x = jax.random.normal(k_x, (B, C, H, W), jnp.float32)
    params = init_params(k_p, C)

    out = jax.block_until_ready(lka_forward(x, params))
    ref = jax.block_until_ready(lka_reference(x, params))

    if out.shape != (B, C, H, W):
        raise RuntimeError(f"bad output shape {out.shape}")
    # Entire kernel path is f32 now (no bf16 MXU); tolerance only covers
    # accumulation-order differences vs. the XLA conv reference.
    if not jnp.allclose(out, ref, atol=1e-3, rtol=1e-3):
        err = float(jnp.max(jnp.abs(out - ref)))
        raise RuntimeError(f"Pallas LKA mismatch vs JAX reference, max|err|={err}")
    print("KERNEL_OK")
</pallas_src>

<mosaic_0001>
module attributes {stable_mosaic.version = 11 : i64} {
  func.func @kernel(%arg0: i32, %arg1: memref<1x16x64xf32, #tpu.memory_space<vmem>>, %arg2: memref<25x64xf32, #tpu.memory_space<vmem>>, %arg3: memref<1x64xf32, #tpu.memory_space<vmem>>, %arg4: memref<49x64xf32, #tpu.memory_space<vmem>>, %arg5: memref<1x64xf32, #tpu.memory_space<vmem>>, %arg6: memref<7x64xf32, #tpu.memory_space<vmem>>, %arg7: memref<1x64xf32, #tpu.memory_space<vmem>>, %arg8: memref<1x16x64xf32, #tpu.memory_space<vmem>>, %arg9: memref<20x80xf32, #tpu.memory_space<vmem>>, %arg10: memref<34x136xf32, #tpu.memory_space<vmem>>) attributes {dimension_semantics = [#tpu.dimension_semantics<parallel>], iteration_bounds = array<i64: 2>, scalar_prefetch = 0 : i64, scratch_operands = 2 : i64, tpu.core_type = #tpu.core_type<tc>, window_params = [{transform_indices = @transform_0, window_bounds = array<i64: 1, 16, 64>}, {pipeline_mode = #tpu.pipeline_mode<synchronous>, transform_indices = @transform_1, window_bounds = array<i64: 25, 64>}, {pipeline_mode = #tpu.pipeline_mode<synchronous>, transform_indices = @transform_2, window_bounds = array<i64: 1, 64>}, {pipeline_mode = #tpu.pipeline_mode<synchronous>, transform_indices = @transform_3, window_bounds = array<i64: 49, 64>}, {pipeline_mode = #tpu.pipeline_mode<synchronous>, transform_indices = @transform_4, window_bounds = array<i64: 1, 64>}, {pipeline_mode = #tpu.pipeline_mode<synchronous>, transform_indices = @transform_5, window_bounds = array<i64: 7, 64>}, {pipeline_mode = #tpu.pipeline_mode<synchronous>, transform_indices = @transform_6, window_bounds = array<i64: 1, 64>}, {transform_indices = @transform_7, window_bounds = array<i64: 1, 16, 64>}]} {
    %c0 = arith.constant 0 : index
    %c0_0 = arith.constant 0 : index
    %c0_1 = arith.constant 0 : index
    %0 = vector.load %arg1[%c0, %c0_0, %c0_1] : memref<1x16x64xf32, #tpu.memory_space<vmem>>, vector<1x16x64xf32>
    %1 = vector.shape_cast %0 : vector<1x16x64xf32> to vector<16x64xf32>
    %cst = arith.constant 0.000000e+00 : f32
    %2 = vector.broadcast %cst : f32 to vector<2x80xf32>
    %cst_2 = arith.constant 0.000000e+00 : f32
    %3 = vector.broadcast %cst_2 : f32 to vector<16x8xf32>
    %c0_3 = arith.constant 0 : index
    %c0_4 = arith.constant 0 : index
    %4 = vector.load %arg9[%c0_3, %c0_4] : memref<20x80xf32, #tpu.memory_space<vmem>>, vector<2x80xf32>
    tpu.vector_store %arg9[%c0_3, %c0_4], %2 {strides = array<i32>} : memref<20x80xf32, #tpu.memory_space<vmem>>, vector<2x80xf32>,
    %c18 = arith.constant 18 : index
    %c0_5 = arith.constant 0 : index
    %5 = vector.load %arg9[%c18, %c0_5] : memref<20x80xf32, #tpu.memory_space<vmem>>, vector<2x80xf32>
    tpu.vector_store %arg9[%c18, %c0_5], %2 {strides = array<i32>} : memref<20x80xf32, #tpu.memory_space<vmem>>, vector<2x80xf32>,
    %6 = tpu.concatenate %3, %1, %3 in 1 : vector<16x8xf32>, vector<16x64xf32>, vector<16x8xf32> -> vector<16x80xf32>
    %c2 = arith.constant 2 : index
    %c0_6 = arith.constant 0 : index
    %7 = vector.load %arg9[%c2, %c0_6] : memref<20x80xf32, #tpu.memory_space<vmem>>, vector<16x80xf32>
    tpu.vector_store %arg9[%c2, %c0_6], %6 {strides = array<i32>} : memref<20x80xf32, #tpu.memory_space<vmem>>, vector<16x80xf32>,
    %c0_7 = arith.constant 0 : index
    %c0_8 = arith.constant 0 : index
    %8 = vector.load %arg3[%c0_7, %c0_8] : memref<1x64xf32, #tpu.memory_space<vmem>>, vector<1x64xf32>
    %9 = vector.shape_cast %8 : vector<1x64xf32> to vector<1x64xf32>
    %10 = vector.broadcast %9 : vector<1x64xf32> to vector<16x64xf32>
    %c0_9 = arith.constant 0 : index
    %c0_10 = arith.constant 0 : index
    %11 = vector.load %arg9[%c0_9, %c0_10] : memref<20x80xf32, #tpu.memory_space<vmem>>, vector<16x64xf32>
    %c0_11 = arith.constant 0 : index
    %c0_12 = arith.constant 0 : index
    %12 = vector.load %arg2[%c0_11, %c0_12] : memref<25x64xf32, #tpu.memory_space<vmem>>, vector<1x64xf32>
    %13 = vector.broadcast %12 : vector<1x64xf32> to vector<16x64xf32>
    %14 = arith.mulf %11, %13 : vector<16x64xf32>
    %15 = arith.addf %10, %14 : vector<16x64xf32>
    %c0_13 = arith.constant 0 : index
    %c4 = arith.constant 4 : index
    %16 = vector.load %arg9[%c0_13, %c4] : memref<20x80xf32, #tpu.memory_space<vmem>>, vector<16x64xf32>
    %c1 = arith.constant 1 : index
    %c0_14 = arith.constant 0 : index
    %17 = vector.load %arg2[%c1, %c0_14] : memref<25x64xf32, #tpu.memory_space<vmem>>, vector<1x64xf32>
    %18 = vector.broadcast %17 : vector<1x64xf32> to vector<16x64xf32>
    %19 = arith.mulf %16, %18 : vector<16x64xf32>
    %20 = arith.addf %15, %19 : vector<16x64xf32>
    %c0_15 = arith.constant 0 : index
    %c8 = arith.constant 8 : index
    %21 = vector.load %arg9[%c0_15, %c8] : memref<20x80xf32, #tpu.memory_space<vmem>>, vector<16x64xf32>
    %c2_16 = arith.constant 2 : index
    %c0_17 = arith.constant 0 : index
    %22 = vector.load %arg2[%c2_16, %c0_17] : memref<25x64xf32, #tpu.memory_space<vmem>>, vector<1x64xf32>
    %23 = vector.broadcast %22 : vector<1x64xf32> to vector<16x64xf32>
    %24 = arith.mulf %21, %23 : vector<16x64xf32>
    %25 = arith.addf %20, %24 : vector<16x64xf32>
    %c0_18 = arith.constant 0 : index
    %c12 = arith.constant 12 : index
    %26 = vector.load %arg9[%c0_18, %c12] : memref<20x80xf32, #tpu.memory_space<vmem>>, vector<16x64xf32>
    %c3 = arith.constant 3 : index
    %c0_19 = arith.constant 0 : index
    %27 = vector.load %arg2[%c3, %c0_19] : memref<25x64xf32, #tpu.memory_space<vmem>>, vector<1x64xf32>
    %28 = vector.broadcast %27 : vector<1x64xf32> to vector<16x64xf32>
    %29 = arith.mulf %26, %28 : vector<16x64xf32>
    %30 = arith.addf %25, %29 : vector<16x64xf32>
    %c0_20 = arith.constant 0 : index
    %c16 = arith.constant 16 : index
    %31 = vector.load %arg9[%c0_20, %c16] : memref<20x80xf32, #tpu.memory_space<vmem>>, vector<16x64xf32>
    %c4_21 = arith.constant 4 : index
    %c0_22 = arith.constant 0 : index
    %32 = vector.load %arg2[%c4_21, %c0_22] : memref<25x64xf32, #tpu.memory_space<vmem>>, vector<1x64xf32>
    %33 = vector.broadcast %32 : vector<1x64xf32> to vector<16x64xf32>
    %34 = arith.mulf %31, %33 : vector<16x64xf32>
    %35 = arith.addf %30, %34 : vector<16x64xf32>
    %c1_23 = arith.constant 1 : index
    %c0_24 = arith.constant 0 : index
    %36 = vector.load %arg9[%c1_23, %c0_24] : memref<20x80xf32, #tpu.memory_space<vmem>>, vector<16x64xf32>
    %c5 = arith.constant 5 : index
    %c0_25 = arith.constant 0 : index
    %37 = vector.load %arg2[%c5, %c0_25] : memref<25x64xf32, #tpu.memory_space<vmem>>, vector<1x64xf32>
    %38 = vector.broadcast %37 : vector<1x64xf32> to vector<16x64xf32>
    %39 = arith.mulf %36, %38 : vector<16x64xf32>
    %40 = arith.addf %35, %39 : vector<16x64xf32>
    %c1_26 = arith.constant 1 : index
    %c4_27 = arith.constant 4 : index
    %41 = vector.load %arg9[%c1_26, %c4_27] : memref<20x80xf32, #tpu.memory_space<vmem>>, vector<16x64xf32>
    %c6 = arith.constant 6 : index
    %c0_28 = arith.constant 0 : index
    %42 = vector.load %arg2[%c6, %c0_28] : memref<25x64xf32, #tpu.memory_space<vmem>>, vector<1x64xf32>
    %43 = vector.broadcast %42 : vector<1x64xf32> to vector<16x64xf32>
    %44 = arith.mulf %41, %43 : vector<16x64xf32>
    %45 = arith.addf %40, %44 : vector<16x64xf32>
    %c1_29 = arith.constant 1 : index
    %c8_30 = arith.constant 8 : index
    %46 = vector.load %arg9[%c1_29, %c8_30] : memref<20x80xf32, #tpu.memory_space<vmem>>, vector<16x64xf32>
    %c7 = arith.constant 7 : index
    %c0_31 = arith.constant 0 : index
    %47 = vector.load %arg2[%c7, %c0_31] : memref<25x64xf32, #tpu.memory_space<vmem>>, vector<1x64xf32>
    %48 = vector.broadcast %47 : vector<1x64xf32> to vector<16x64xf32>
    %49 = arith.mulf %46, %48 : vector<16x64xf32>
    %50 = arith.addf %45, %49 : vector<16x64xf32>
    %c1_32 = arith.constant 1 : index
    %c12_33 = arith.constant 12 : index
    %51 = vector.load %arg9[%c1_32, %c12_33] : memref<20x80xf32, #tpu.memory_space<vmem>>, vector<16x64xf32>
    %c8_34 = arith.constant 8 : index
    %c0_35 = arith.constant 0 : index
    %52 = vector.load %arg2[%c8_34, %c0_35] : memref<25x64xf32, #tpu.memory_space<vmem>>, vector<1x64xf32>
    %53 = vector.broadcast %52 : vector<1x64xf32> to vector<16x64xf32>
    %54 = arith.mulf %51, %53 : vector<16x64xf32>
    %55 = arith.addf %50, %54 : vector<16x64xf32>
    %c1_36 = arith.constant 1 : index
    %c16_37 = arith.constant 16 : index
    %56 = vector.load %arg9[%c1_36, %c16_37] : memref<20x80xf32, #tpu.memory_space<vmem>>, vector<16x64xf32>
    %c9 = arith.constant 9 : index
    %c0_38 = arith.constant 0 : index
    %57 = vector.load %arg2[%c9, %c0_38] : memref<25x64xf32, #tpu.memory_space<vmem>>, vector<1x64xf32>
    %58 = vector.broadcast %57 : vector<1x64xf32> to vector<16x64xf32>
    %59 = arith.mulf %56, %58 : vector<16x64xf32>
    %60 = arith.addf %55, %59 : vector<16x64xf32>
    %c2_39 = arith.constant 2 : index
    %c0_40 = arith.constant 0 : index
    %61 = vector.load %arg9[%c2_39, %c0_40] : memref<20x80xf32, #tpu.memory_space<vmem>>, vector<16x64xf32>
    %c10 = arith.constant 10 : index
    %c0_41 = arith.constant 0 : index
    %62 = vector.load %arg2[%c10, %c0_41] : memref<25x64xf32, #tpu.memory_space<vmem>>, vector<1x64xf32>
    %63 = vector.broadcast %62 : vector<1x64xf32> to vector<16x64xf32>
    %64 = arith.mulf %61, %63 : vector<16x64xf32>
    %65 = arith.addf %60, %64 : vector<16x64xf32>
    %c2_42 = arith.constant 2 : index
    %c4_43 = arith.constant 4 : index
    %66 = vector.load %arg9[%c2_42, %c4_43] : memref<20x80xf32, #tpu.memory_space<vmem>>, vector<16x64xf32>
    %c11 = arith.constant 11 : index
    %c0_44 = arith.constant 0 : index
    %67 = vector.load %arg2[%c11, %c0_44] : memref<25x64xf32, #tpu.memory_space<vmem>>, vector<1x64xf32>
    %68 = vector.broadcast %67 : vector<1x64xf32> to vector<16x64xf32>
    %69 = arith.mulf %66, %68 : vector<16x64xf32>
    %70 = arith.addf %65, %69 : vector<16x64xf32>
    %c2_45 = arith.constant 2 : index
    %c8_46 = arith.constant 8 : index
    %71 = vector.load %arg9[%c2_45, %c8_46] : memref<20x80xf32, #tpu.memory_space<vmem>>, vector<16x64xf32>
    %c12_47 = arith.constant 12 : index
    %c0_48 = arith.constant 0 : index
    %72 = vector.load %arg2[%c12_47, %c0_48] : memref<25x64xf32, #tpu.memory_space<vmem>>, vector<1x64xf32>
    %73 = vector.broadcast %72 : vector<1x64xf32> to vector<16x64xf32>
    %74 = arith.mulf %71, %73 : vector<16x64xf32>
    %75 = arith.addf %70, %74 : vector<16x64xf32>
    %c2_49 = arith.constant 2 : index
    %c12_50 = arith.constant 12 : index
    %76 = vector.load %arg9[%c2_49, %c12_50] : memref<20x80xf32, #tpu.memory_space<vmem>>, vector<16x64xf32>
    %c13 = arith.constant 13 : index
    %c0_51 = arith.constant 0 : index
    %77 = vector.load %arg2[%c13, %c0_51] : memref<25x64xf32, #tpu.memory_space<vmem>>, vector<1x64xf32>
    %78 = vector.broadcast %77 : vector<1x64xf32> to vector<16x64xf32>
    %79 = arith.mulf %76, %78 : vector<16x64xf32>
    %80 = arith.addf %75, %79 : vector<16x64xf32>
    %c2_52 = arith.constant 2 : index
    %c16_53 = arith.constant 16 : index
    %81 = vector.load %arg9[%c2_52, %c16_53] : memref<20x80xf32, #tpu.memory_space<vmem>>, vector<16x64xf32>
    %c14 = arith.constant 14 : index
    %c0_54 = arith.constant 0 : index
    %82 = vector.load %arg2[%c14, %c0_54] : memref<25x64xf32, #tpu.memory_space<vmem>>, vector<1x64xf32>
    %83 = vector.broadcast %82 : vector<1x64xf32> to vector<16x64xf32>
    %84 = arith.mulf %81, %83 : vector<16x64xf32>
    %85 = arith.addf %80, %84 : vector<16x64xf32>
    %c3_55 = arith.constant 3 : index
    %c0_56 = arith.constant 0 : index
    %86 = vector.load %arg9[%c3_55, %c0_56] : memref<20x80xf32, #tpu.memory_space<vmem>>, vector<16x64xf32>
    %c15 = arith.constant 15 : index
    %c0_57 = arith.constant 0 : index
    %87 = vector.load %arg2[%c15, %c0_57] : memref<25x64xf32, #tpu.memory_space<vmem>>, vector<1x64xf32>
    %88 = vector.broadcast %87 : vector<1x64xf32> to vector<16x64xf32>
    %89 = arith.mulf %86, %88 : vector<16x64xf32>
    %90 = arith.addf %85, %89 : vector<16x64xf32>
    %c3_58 = arith.constant 3 : index
    %c4_59 = arith.constant 4 : index
    %91 = vector.load %arg9[%c3_58, %c4_59] : memref<20x80xf32, #tpu.memory_space<vmem>>, vector<16x64xf32>
    %c16_60 = arith.constant 16 : index
    %c0_61 = arith.constant 0 : index
    %92 = vector.load %arg2[%c16_60, %c0_61] : memref<25x64xf32, #tpu.memory_space<vmem>>, vector<1x64xf32>
    %93 = vector.broadcast %92 : vector<1x64xf32> to vector<16x64xf32>
    %94 = arith.mulf %91, %93 : vector<16x64xf32>
    %95 = arith.addf %90, %94 : vector<16x64xf32>
    %c3_62 = arith.constant 3 : index
    %c8_63 = arith.constant 8 : index
    %96 = vector.load %arg9[%c3_62, %c8_63] : memref<20x80xf32, #tpu.memory_space<vmem>>, vector<16x64xf32>
    %c17 = arith.constant 17 : index
    %c0_64 = arith.constant 0 : index
    %97 = vector.load %arg2[%c17, %c0_64] : memref<25x64xf32, #tpu.memory_space<vmem>>, vector<1x64xf32>
    %98 = vector.broadcast %97 : vector<1x64xf32> to vector<16x64xf32>
    %99 = arith.mulf %96, %98 : vector<16x64xf32>
    %100 = arith.addf %95, %99 : vector<16x64xf32>
    %c3_65 = arith.constant 3 : index
    %c12_66 = arith.constant 12 : index
    %101 = vector.load %arg9[%c3_65, %c12_66] : memref<20x80xf32, #tpu.memory_space<vmem>>, vector<16x64xf32>
    %c18_67 = arith.constant 18 : index
    %c0_68 = arith.constant 0 : index
    %102 = vector.load %arg2[%c18_67, %c0_68] : memref<25x64xf32, #tpu.memory_space<vmem>>, vector<1x64xf32>
    %103 = vector.broadcast %102 : vector<1x64xf32> to vector<16x64xf32>
    %104 = arith.mulf %101, %103 : vector<16x64xf32>
    %105 = arith.addf %100, %104 : vector<16x64xf32>
    %c3_69 = arith.constant 3 : index
    %c16_70 = arith.constant 16 : index
    %106 = vector.load %arg9[%c3_69, %c16_70] : memref<20x80xf32, #tpu.memory_space<vmem>>, vector<16x64xf32>
    %c19 = arith.constant 19 : index
    %c0_71 = arith.constant 0 : index
    %107 = vector.load %arg2[%c19, %c0_71] : memref<25x64xf32, #tpu.memory_space<vmem>>, vector<1x64xf32>
    %108 = vector.broadcast %107 : vector<1x64xf32> to vector<16x64xf32>
    %109 = arith.mulf %106, %108 : vector<16x64xf32>
    %110 = arith.addf %105, %109 : vector<16x64xf32>
    %c4_72 = arith.constant 4 : index
    %c0_73 = arith.constant 0 : index
    %111 = vector.load %arg9[%c4_72, %c0_73] : memref<20x80xf32, #tpu.memory_space<vmem>>, vector<16x64xf32>
    %c20 = arith.constant 20 : index
    %c0_74 = arith.constant 0 : index
    %112 = vector.load %arg2[%c20, %c0_74] : memref<25x64xf32, #tpu.memory_space<vmem>>, vector<1x64xf32>
    %113 = vector.broadcast %112 : vector<1x64xf32> to vector<16x64xf32>
    %114 = arith.mulf %111, %113 : vector<16x64xf32>
    %115 = arith.addf %110, %114 : vector<16x64xf32>
    %c4_75 = arith.constant 4 : index
    %c4_76 = arith.constant 4 : index
    %116 = vector.load %arg9[%c4_75, %c4_76] : memref<20x80xf32, #tpu.memory_space<vmem>>, vector<16x64xf32>
    %c21 = arith.constant 21 : index
    %c0_77 = arith.constant 0 : index
    %117 = vector.load %arg2[%c21, %c0_77] : memref<25x64xf32, #tpu.memory_space<vmem>>, vector<1x64xf32>
    %118 = vector.broadcast %117 : vector<1x64xf32> to vector<16x64xf32>
    %119 = arith.mulf %116, %118 : vector<16x64xf32>
    %120 = arith.addf %115, %119 : vector<16x64xf32>
    %c4_78 = arith.constant 4 : index
    %c8_79 = arith.constant 8 : index
    %121 = vector.load %arg9[%c4_78, %c8_79] : memref<20x80xf32, #tpu.memory_space<vmem>>, vector<16x64xf32>
    %c22 = arith.constant 22 : index
    %c0_80 = arith.constant 0 : index
    %122 = vector.load %arg2[%c22, %c0_80] : memref<25x64xf32, #tpu.memory_space<vmem>>, vector<1x64xf32>
    %123 = vector.broadcast %122 : vector<1x64xf32> to vector<16x64xf32>
    %124 = arith.mulf %121, %123 : vector<16x64xf32>
    %125 = arith.addf %120, %124 : vector<16x64xf32>
    %c4_81 = arith.constant 4 : index
    %c12_82 = arith.constant 12 : index
    %126 = vector.load %arg9[%c4_81, %c12_82] : memref<20x80xf32, #tpu.memory_space<vmem>>, vector<16x64xf32>
    %c23 = arith.constant 23 : index
    %c0_83 = arith.constant 0 : index
    %127 = vector.load %arg2[%c23, %c0_83] : memref<25x64xf32, #tpu.memory_space<vmem>>, vector<1x64xf32>
    %128 = vector.broadcast %127 : vector<1x64xf32> to vector<16x64xf32>
    %129 = arith.mulf %126, %128 : vector<16x64xf32>
    %130 = arith.addf %125, %129 : vector<16x64xf32>
    %c4_84 = arith.constant 4 : index
    %c16_85 = arith.constant 16 : index
    %131 = vector.load %arg9[%c4_84, %c16_85] : memref<20x80xf32, #tpu.memory_space<vmem>>, vector<16x64xf32>
    %c24 = arith.constant 24 : index
    %c0_86 = arith.constant 0 : index
    %132 = vector.load %arg2[%c24, %c0_86] : memref<25x64xf32, #tpu.memory_space<vmem>>, vector<1x64xf32>
    %133 = vector.broadcast %132 : vector<1x64xf32> to vector<16x64xf32>
    %134 = arith.mulf %131, %133 : vector<16x64xf32>
    %135 = arith.addf %130, %134 : vector<16x64xf32>
    %cst_87 = arith.constant 0.000000e+00 : f32
    %136 = vector.broadcast %cst_87 : f32 to vector<9x136xf32>
    %cst_88 = arith.constant 0.000000e+00 : f32
    %137 = vector.broadcast %cst_88 : f32 to vector<16x36xf32>
    %c0_89 = arith.constant 0 : index
    %c0_90 = arith.constant 0 : index
    %138 = vector.load %arg10[%c0_89, %c0_90] : memref<34x136xf32, #tpu.memory_space<vmem>>, vector<9x136xf32>
    tpu.vector_store %arg10[%c0_89, %c0_90], %136 {strides = array<i32>} : memref<34x136xf32, #tpu.memory_space<vmem>>, vector<9x136xf32>,
    %c25 = arith.constant 25 : index
    %c0_91 = arith.constant 0 : index
    %139 = vector.load %arg10[%c25, %c0_91] : memref<34x136xf32, #tpu.memory_space<vmem>>, vector<9x136xf32>
    tpu.vector_store %arg10[%c25, %c0_91], %136 {strides = array<i32>} : memref<34x136xf32, #tpu.memory_space<vmem>>, vector<9x136xf32>,
    %140 = tpu.concatenate %137, %135, %137 in 1 : vector<16x36xf32>, vector<16x64xf32>, vector<16x36xf32> -> vector<16x136xf32>
    %c9_92 = arith.constant 9 : index
    %c0_93 = arith.constant 0 : index
    %141 = vector.load %arg10[%c9_92, %c0_93] : memref<34x136xf32, #tpu.memory_space<vmem>>, vector<16x136xf32>
    tpu.vector_store %arg10[%c9_92, %c0_93], %140 {strides = array<i32>} : memref<34x136xf32, #tpu.memory_space<vmem>>, vector<16x136xf32>,
    %c0_94 = arith.constant 0 : index
    %c0_95 = arith.constant 0 : index
    %142 = vector.load %arg5[%c0_94, %c0_95] : memref<1x64xf32, #tpu.memory_space<vmem>>, vector<1x64xf32>
    %143 = vector.shape_cast %142 : vector<1x64xf32> to vector<1x64xf32>
    %144 = vector.broadcast %143 : vector<1x64xf32> to vector<16x64xf32>
    %c0_96 = arith.constant 0 : index
    %c0_97 = arith.constant 0 : index
    %145 = vector.load %arg10[%c0_96, %c0_97] : memref<34x136xf32, #tpu.memory_space<vmem>>, vector<16x64xf32>
    %c0_98 = arith.constant 0 : index
    %c0_99 = arith.constant 0 : index
    %146 = vector.load %arg4[%c0_98, %c0_99] : memref<49x64xf32, #tpu.memory_space<vmem>>, vector<1x64xf32>
    %147 = vector.broadcast %146 : vector<1x64xf32> to vector<16x64xf32>
    %148 = arith.mulf %145, %147 : vector<16x64xf32>
    %149 = arith.addf %144, %148 : vector<16x64xf32>
    %c0_100 = arith.constant 0 : index
    %c12_101 = arith.constant 12 : index
    %150 = vector.load %arg10[%c0_100, %c12_101] : memref<34x136xf32, #tpu.memory_space<vmem>>, vector<16x64xf32>
    %c1_102 = arith.constant 1 : index
    %c0_103 = arith.constant 0 : index
    %151 = vector.load %arg4[%c1_102, %c0_103] : memref<49x64xf32, #tpu.memory_space<vmem>>, vector<1x64xf32>
    %152 = vector.broadcast %151 : vector<1x64xf32> to vector<16x64xf32>
    %153 = arith.mulf %150, %152 : vector<16x64xf32>
    %154 = arith.addf %149, %153 : vector<16x64xf32>
    %c0_104 = arith.constant 0 : index
    %c24_105 = arith.constant 24 : index
    %155 = vector.load %arg10[%c0_104, %c24_105] : memref<34x136xf32, #tpu.memory_space<vmem>>, vector<16x64xf32>
    %c2_106 = arith.constant 2 : index
    %c0_107 = arith.constant 0 : index
    %156 = vector.load %arg4[%c2_106, %c0_107] : memref<49x64xf32, #tpu.memory_space<vmem>>, vector<1x64xf32>
    %157 = vector.broadcast %156 : vector<1x64xf32> to vector<16x64xf32>
    %158 = arith.mulf %155, %157 : vector<16x64xf32>
    %159 = arith.addf %154, %158 : vector<16x64xf32>
    %c0_108 = arith.constant 0 : index
    %c36 = arith.constant 36 : index
    %160 = vector.load %arg10[%c0_108, %c36] : memref<34x136xf32, #tpu.memory_space<vmem>>, vector<16x64xf32>
    %c3_109 = arith.constant 3 : index
    %c0_110 = arith.constant 0 : index
    %161 = vector.load %arg4[%c3_109, %c0_110] : memref<49x64xf32, #tpu.memory_space<vmem>>, vector<1x64xf32>
    %162 = vector.broadcast %161 : vector<1x64xf32> to vector<16x64xf32>
    %163 = arith.mulf %160, %162 : vector<16x64xf32>
    %164 = arith.addf %159, %163 : vector<16x64xf32>
    %c0_111 = arith.constant 0 : index
    %c48 = arith.constant 48 : index
    %165 = vector.load %arg10[%c0_111, %c48] : memref<34x136xf32, #tpu.memory_space<vmem>>, vector<16x64xf32>
    %c4_112 = arith.constant 4 : index
    %c0_113 = arith.constant 0 : index
    %166 = vector.load %arg4[%c4_112, %c0_113] : memref<49x64xf32, #tpu.memory_space<vmem>>, vector<1x64xf32>
    %167 = vector.broadcast %166 : vector<1x64xf32> to vector<16x64xf32>
    %168 = arith.mulf %165, %167 : vector<16x64xf32>
    %169 = arith.addf %164, %168 : vector<16x64xf32>
    %c0_114 = arith.constant 0 : index
    %c60 = arith.constant 60 : index
    %170 = vector.load %arg10[%c0_114, %c60] : memref<34x136xf32, #tpu.memory_space<vmem>>, vector<16x64xf32>
    %c5_115 = arith.constant 5 : index
    %c0_116 = arith.constant 0 : index
    %171 = vector.load %arg4[%c5_115, %c0_116] : memref<49x64xf32, #tpu.memory_space<vmem>>, vector<1x64xf32>
    %172 = vector.broadcast %171 : vector<1x64xf32> to vector<16x64xf32>
    %173 = arith.mulf %170, %172 : vector<16x64xf32>
    %174 = arith.addf %169, %173 : vector<16x64xf32>
    %c0_117 = arith.constant 0 : index
    %c72 = arith.constant 72 : index
    %175 = vector.load %arg10[%c0_117, %c72] : memref<34x136xf32, #tpu.memory_space<vmem>>, vector<16x64xf32>
    %c6_118 = arith.constant 6 : index
    %c0_119 = arith.constant 0 : index
    %176 = vector.load %arg4[%c6_118, %c0_119] : memref<49x64xf32, #tpu.memory_space<vmem>>, vector<1x64xf32>
    %177 = vector.broadcast %176 : vector<1x64xf32> to vector<16x64xf32>
    %178 = arith.mulf %175, %177 : vector<16x64xf32>
    %179 = arith.addf %174, %178 : vector<16x64xf32>
    %c3_120 = arith.constant 3 : index
    %c0_121 = arith.constant 0 : index
    %180 = vector.load %arg10[%c3_120, %c0_121] : memref<34x136xf32, #tpu.memory_space<vmem>>, vector<16x64xf32>
    %c7_122 = arith.constant 7 : index
    %c0_123 = arith.constant 0 : index
    %181 = vector.load %arg4[%c7_122, %c0_123] : memref<49x64xf32, #tpu.memory_space<vmem>>, vector<1x64xf32>
    %182 = vector.broadcast %181 : vector<1x64xf32> to vector<16x64xf32>
    %183 = arith.mulf %180, %182 : vector<16x64xf32>
    %184 = arith.addf %179, %183 : vector<16x64xf32>
    %c3_124 = arith.constant 3 : index
    %c12_125 = arith.constant 12 : index
    %185 = vector.load %arg10[%c3_124, %c12_125] : memref<34x136xf32, #tpu.memory_space<vmem>>, vector<16x64xf32>
    %c8_126 = arith.constant 8 : index
    %c0_127 = arith.constant 0 : index
    %186 = vector.load %arg4[%c8_126, %c0_127] : memref<49x64xf32, #tpu.memory_space<vmem>>, vector<1x64xf32>
    %187 = vector.broadcast %186 : vector<1x64xf32> to vector<16x64xf32>
    %188 = arith.mulf %185, %187 : vector<16x64xf32>
    %189 = arith.addf %184, %188 : vector<16x64xf32>
    %c3_128 = arith.constant 3 : index
    %c24_129 = arith.constant 24 : index
    %190 = vector.load %arg10[%c3_128, %c24_129] : memref<34x136xf32, #tpu.memory_space<vmem>>, vector<16x64xf32>
    %c9_130 = arith.constant 9 : index
    %c0_131 = arith.constant 0 : index
    %191 = vector.load %arg4[%c9_130, %c0_131] : memref<49x64xf32, #tpu.memory_space<vmem>>, vector<1x64xf32>
    %192 = vector.broadcast %191 : vector<1x64xf32> to vector<16x64xf32>
    %193 = arith.mulf %190, %192 : vector<16x64xf32>
    %194 = arith.addf %189, %193 : vector<16x64xf32>
    %c3_132 = arith.constant 3 : index
    %c36_133 = arith.constant 36 : index
    %195 = vector.load %arg10[%c3_132, %c36_133] : memref<34x136xf32, #tpu.memory_space<vmem>>, vector<16x64xf32>
    %c10_134 = arith.constant 10 : index
    %c0_135 = arith.constant 0 : index
    %196 = vector.load %arg4[%c10_134, %c0_135] : memref<49x64xf32, #tpu.memory_space<vmem>>, vector<1x64xf32>
    %197 = vector.broadcast %196 : vector<1x64xf32> to vector<16x64xf32>
    %198 = arith.mulf %195, %197 : vector<16x64xf32>
    %199 = arith.addf %194, %198 : vector<16x64xf32>
    %c3_136 = arith.constant 3 : index
    %c48_137 = arith.constant 48 : index
    %200 = vector.load %arg10[%c3_136, %c48_137] : memref<34x136xf32, #tpu.memory_space<vmem>>, vector<16x64xf32>
    %c11_138 = arith.constant 11 : index
    %c0_139 = arith.constant 0 : index
    %201 = vector.load %arg4[%c11_138, %c0_139] : memref<49x64xf32, #tpu.memory_space<vmem>>, vector<1x64xf32>
    %202 = vector.broadcast %201 : vector<1x64xf32> to vector<16x64xf32>
    %203 = arith.mulf %200, %202 : vector<16x64xf32>
    %204 = arith.addf %199, %203 : vector<16x64xf32>
    %c3_140 = arith.constant 3 : index
    %c60_141 = arith.constant 60 : index
    %205 = vector.load %arg10[%c3_140, %c60_141] : memref<34x136xf32, #tpu.memory_space<vmem>>, vector<16x64xf32>
    %c12_142 = arith.constant 12 : index
    %c0_143 = arith.constant 0 : index
    %206 = vector.load %arg4[%c12_142, %c0_143] : memref<49x64xf32, #tpu.memory_space<vmem>>, vector<1x64xf32>
    %207 = vector.broadcast %206 : vector<1x64xf32> to vector<16x64xf32>
    %208 = arith.mulf %205, %207 : vector<16x64xf32>
    %209 = arith.addf %204, %208 : vector<16x64xf32>
    %c3_144 = arith.constant 3 : index
    %c72_145 = arith.constant 72 : index
    %210 = vector.load %arg10[%c3_144, %c72_145] : memref<34x136xf32, #tpu.memory_space<vmem>>, vector<16x64xf32>
    %c13_146 = arith.constant 13 : index
    %c0_147 = arith.constant 0 : index
    %211 = vector.load %arg4[%c13_146, %c0_147] : memref<49x64xf32, #tpu.memory_space<vmem>>, vector<1x64xf32>
    %212 = vector.broadcast %211 : vector<1x64xf32> to vector<16x64xf32>
    %213 = arith.mulf %210, %212 : vector<16x64xf32>
    %214 = arith.addf %209, %213 : vector<16x64xf32>
    %c6_148 = arith.constant 6 : index
    %c0_149 = arith.constant 0 : index
    %215 = vector.load %arg10[%c6_148, %c0_149] : memref<34x136xf32, #tpu.memory_space<vmem>>, vector<16x64xf32>
    %c14_150 = arith.constant 14 : index
    %c0_151 = arith.constant 0 : index
    %216 = vector.load %arg4[%c14_150, %c0_151] : memref<49x64xf32, #tpu.memory_space<vmem>>, vector<1x64xf32>
    %217 = vector.broadcast %216 : vector<1x64xf32> to vector<16x64xf32>
    %218 = arith.mulf %215, %217 : vector<16x64xf32>
    %219 = arith.addf %214, %218 : vector<16x64xf32>
    %c6_152 = arith.constant 6 : index
    %c12_153 = arith.constant 12 : index
    %220 = vector.load %arg10[%c6_152, %c12_153] : memref<34x136xf32, #tpu.memory_space<vmem>>, vector<16x64xf32>
    %c15_154 = arith.constant 15 : index
    %c0_155 = arith.constant 0 : index
    %221 = vector.load %arg4[%c15_154, %c0_155] : memref<49x64xf32, #tpu.memory_space<vmem>>, vector<1x64xf32>
    %222 = vector.broadcast %221 : vector<1x64xf32> to vector<16x64xf32>
    %223 = arith.mulf %220, %222 : vector<16x64xf32>
    %224 = arith.addf %219, %223 : vector<16x64xf32>
    %c6_156 = arith.constant 6 : index
    %c24_157 = arith.constant 24 : index
    %225 = vector.load %arg10[%c6_156, %c24_157] : memref<34x136xf32, #tpu.memory_space<vmem>>, vector<16x64xf32>
    %c16_158 = arith.constant 16 : index
    %c0_159 = arith.constant 0 : index
    %226 = vector.load %arg4[%c16_158, %c0_159] : memref<49x64xf32, #tpu.memory_space<vmem>>, vector<1x64xf32>
    %227 = vector.broadcast %226 : vector<1x64xf32> to vector<16x64xf32>
    %228 = arith.mulf %225, %227 : vector<16x64xf32>
    %229 = arith.addf %224, %228 : vector<16x64xf32>
    %c6_160 = arith.constant 6 : index
    %c36_161 = arith.constant 36 : index
    %230 = vector.load %arg10[%c6_160, %c36_161] : memref<34x136xf32, #tpu.memory_space<vmem>>, vector<16x64xf32>
    %c17_162 = arith.constant 17 : index
    %c0_163 = arith.constant 0 : index
    %231 = vector.load %arg4[%c17_162, %c0_163] : memref<49x64xf32, #tpu.memory_space<vmem>>, vector<1x64xf32>
    %232 = vector.broadcast %231 : vector<1x64xf32> to vector<16x64xf32>
    %233 = arith.mulf %230, %232 : vector<16x64xf32>
    %234 = arith.addf %229, %233 : vector<16x64xf32>
    %c6_164 = arith.constant 6 : index
    %c48_165 = arith.constant 48 : index
    %235 = vector.load %arg10[%c6_164, %c48_165] : memref<34x136xf32, #tpu.memory_space<vmem>>, vector<16x64xf32>
    %c18_166 = arith.constant 18 : index
    %c0_167 = arith.constant 0 : index
    %236 = vector.load %arg4[%c18_166, %c0_167] : memref<49x64xf32, #tpu.memory_space<vmem>>, vector<1x64xf32>
    %237 = vector.broadcast %236 : vector<1x64xf32> to vector<16x64xf32>
    %238 = arith.mulf %235, %237 : vector<16x64xf32>
    %239 = arith.addf %234, %238 : vector<16x64xf32>
    %c6_168 = arith.constant 6 : index
    %c60_169 = arith.constant 60 : index
    %240 = vector.load %arg10[%c6_168, %c60_169] : memref<34x136xf32, #tpu.memory_space<vmem>>, vector<16x64xf32>
    %c19_170 = arith.constant 19 : index
    %c0_171 = arith.constant 0 : index
    %241 = vector.load %arg4[%c19_170, %c0_171] : memref<49x64xf32, #tpu.memory_space<vmem>>, vector<1x64xf32>
    %242 = vector.broadcast %241 : vector<1x64xf32> to vector<16x64xf32>
    %243 = arith.mulf %240, %242 : vector<16x64xf32>
    %244 = arith.addf %239, %243 : vector<16x64xf32>
    %c6_172 = arith.constant 6 : index
    %c72_173 = arith.constant 72 : index
    %245 = vector.load %arg10[%c6_172, %c72_173] : memref<34x136xf32, #tpu.memory_space<vmem>>, vector<16x64xf32>
    %c20_174 = arith.constant 20 : index
    %c0_175 = arith.constant 0 : index
    %246 = vector.load %arg4[%c20_174, %c0_175] : memref<49x64xf32, #tpu.memory_space<vmem>>, vector<1x64xf32>
    %247 = vector.broadcast %246 : vector<1x64xf32> to vector<16x64xf32>
    %248 = arith.mulf %245, %247 : vector<16x64xf32>
    %249 = arith.addf %244, %248 : vector<16x64xf32>
    %c9_176 = arith.constant 9 : index
    %c0_177 = arith.constant 0 : index
    %250 = vector.load %arg10[%c9_176, %c0_177] : memref<34x136xf32, #tpu.memory_space<vmem>>, vector<16x64xf32>
    %c21_178 = arith.constant 21 : index
    %c0_179 = arith.constant 0 : index
    %251 = vector.load %arg4[%c21_178, %c0_179] : memref<49x64xf32, #tpu.memory_space<vmem>>, vector<1x64xf32>
    %252 = vector.broadcast %251 : vector<1x64xf32> to vector<16x64xf32>
    %253 = arith.mulf %250, %252 : vector<16x64xf32>
    %254 = arith.addf %249, %253 : vector<16x64xf32>
    %c9_180 = arith.constant 9 : index
    %c12_181 = arith.constant 12 : index
    %255 = vector.load %arg10[%c9_180, %c12_181] : memref<34x136xf32, #tpu.memory_space<vmem>>, vector<16x64xf32>
    %c22_182 = arith.constant 22 : index
    %c0_183 = arith.constant 0 : index
    %256 = vector.load %arg4[%c22_182, %c0_183] : memref<49x64xf32, #tpu.memory_space<vmem>>, vector<1x64xf32>
    %257 = vector.broadcast %256 : vector<1x64xf32> to vector<16x64xf32>
    %258 = arith.mulf %255, %257 : vector<16x64xf32>
    %259 = arith.addf %254, %258 : vector<16x64xf32>
    %c9_184 = arith.constant 9 : index
    %c24_185 = arith.constant 24 : index
    %260 = vector.load %arg10[%c9_184, %c24_185] : memref<34x136xf32, #tpu.memory_space<vmem>>, vector<16x64xf32>
    %c23_186 = arith.constant 23 : index
    %c0_187 = arith.constant 0 : index
    %261 = vector.load %arg4[%c23_186, %c0_187] : memref<49x64xf32, #tpu.memory_space<vmem>>, vector<1x64xf32>
    %262 = vector.broadcast %261 : vector<1x64xf32> to vector<16x64xf32>
    %263 = arith.mulf %260, %262 : vector<16x64xf32>
    %264 = arith.addf %259, %263 : vector<16x64xf32>
    %c9_188 = arith.constant 9 : index
    %c36_189 = arith.constant 36 : index
    %265 = vector.load %arg10[%c9_188, %c36_189] : memref<34x136xf32, #tpu.memory_space<vmem>>, vector<16x64xf32>
    %c24_190 = arith.constant 24 : index
    %c0_191 = arith.constant 0 : index
    %266 = vector.load %arg4[%c24_190, %c0_191] : memref<49x64xf32, #tpu.memory_space<vmem>>, vector<1x64xf32>
    %267 = vector.broadcast %266 : vector<1x64xf32> to vector<16x64xf32>
    %268 = arith.mulf %265, %267 : vector<16x64xf32>
    %269 = arith.addf %264, %268 : vector<16x64xf32>
    %c9_192 = arith.constant 9 : index
    %c48_193 = arith.constant 48 : index
    %270 = vector.load %arg10[%c9_192, %c48_193] : memref<34x136xf32, #tpu.memory_space<vmem>>, vector<16x64xf32>
    %c25_194 = arith.constant 25 : index
    %c0_195 = arith.constant 0 : index
    %271 = vector.load %arg4[%c25_194, %c0_195] : memref<49x64xf32, #tpu.memory_space<vmem>>, vector<1x64xf32>
    %272 = vector.broadcast %271 : vector<1x64xf32> to vector<16x64xf32>
    %273 = arith.mulf %270, %272 : vector<16x64xf32>
    %274 = arith.addf %269, %273 : vector<16x64xf32>
    %c9_196 = arith.constant 9 : index
    %c60_197 = arith.constant 60 : index
    %275 = vector.load %arg10[%c9_196, %c60_197] : memref<34x136xf32, #tpu.memory_space<vmem>>, vector<16x64xf32>
    %c26 = arith.constant 26 : index
    %c0_198 = arith.constant 0 : index
    %276 = vector.load %arg4[%c26, %c0_198] : memref<49x64xf32, #tpu.memory_space<vmem>>, vector<1x64xf32>
    %277 = vector.broadcast %276 : vector<1x64xf32> to vector<16x64xf32>
    %278 = arith.mulf %275, %277 : vector<16x64xf32>
    %279 = arith.addf %274, %278 : vector<16x64xf32>
    %c9_199 = arith.constant 9 : index
    %c72_200 = arith.constant 72 : index
    %280 = vector.load %arg10[%c9_199, %c72_200] : memref<34x136xf32, #tpu.memory_space<vmem>>, vector<16x64xf32>
    %c27 = arith.constant 27 : index
    %c0_201 = arith.constant 0 : index
    %281 = vector.load %arg4[%c27, %c0_201] : memref<49x64xf32, #tpu.memory_space<vmem>>, vector<1x64xf32>
    %282 = vector.broadcast %281 : vector<1x64xf32> to vector<16x64xf32>
    %283 = arith.mulf %280, %282 : vector<16x64xf32>
    %284 = arith.addf %279, %283 : vector<16x64xf32>
    %c12_202 = arith.constant 12 : index
    %c0_203 = arith.constant 0 : index
    %285 = vector.load %arg10[%c12_202, %c0_203] : memref<34x136xf32, #tpu.memory_space<vmem>>, vector<16x64xf32>
    %c28 = arith.constant 28 : index
    %c0_204 = arith.constant 0 : index
    %286 = vector.load %arg4[%c28, %c0_204] : memref<49x64xf32, #tpu.memory_space<vmem>>, vector<1x64xf32>
    %287 = vector.broadcast %286 : vector<1x64xf32> to vector<16x64xf32>
    %288 = arith.mulf %285, %287 : vector<16x64xf32>
    %289 = arith.addf %284, %288 : vector<16x64xf32>
    %c12_205 = arith.constant 12 : index
    %c12_206 = arith.constant 12 : index
    %290 = vector.load %arg10[%c12_205, %c12_206] : memref<34x136xf32, #tpu.memory_space<vmem>>, vector<16x64xf32>
    %c29 = arith.constant 29 : index
    %c0_207 = arith.constant 0 : index
    %291 = vector.load %arg4[%c29, %c0_207] : memref<49x64xf32, #tpu.memory_space<vmem>>, vector<1x64xf32>
    %292 = vector.broadcast %291 : vector<1x64xf32> to vector<16x64xf32>
    %293 = arith.mulf %290, %292 : vector<16x64xf32>
    %294 = arith.addf %289, %293 : vector<16x64xf32>
    %c12_208 = arith.constant 12 : index
    %c24_209 = arith.constant 24 : index
    %295 = vector.load %arg10[%c12_208, %c24_209] : memref<34x136xf32, #tpu.memory_space<vmem>>, vector<16x64xf32>
    %c30 = arith.constant 30 : index
    %c0_210 = arith.constant 0 : index
    %296 = vector.load %arg4[%c30, %c0_210] : memref<49x64xf32, #tpu.memory_space<vmem>>, vector<1x64xf32>
    %297 = vector.broadcast %296 : vector<1x64xf32> to vector<16x64xf32>
    %298 = arith.mulf %295, %297 : vector<16x64xf32>
    %299 = arith.addf %294, %298 : vector<16x64xf32>
    %c12_211 = arith.constant 12 : index
    %c36_212 = arith.constant 36 : index
    %300 = vector.load %arg10[%c12_211, %c36_212] : memref<34x136xf32, #tpu.memory_space<vmem>>, vector<16x64xf32>
    %c31 = arith.constant 31 : index
    %c0_213 = arith.constant 0 : index
    %301 = vector.load %arg4[%c31, %c0_213] : memref<49x64xf32, #tpu.memory_space<vmem>>, vector<1x64xf32>
    %302 = vector.broadcast %301 : vector<1x64xf32> to vector<16x64xf32>
    %303 = arith.mulf %300, %302 : vector<16x64xf32>
    %304 = arith.addf %299, %303 : vector<16x64xf32>
    %c12_214 = arith.constant 12 : index
    %c48_215 = arith.constant 48 : index
    %305 = vector.load %arg10[%c12_214, %c48_215] : memref<34x136xf32, #tpu.memory_space<vmem>>, vector<16x64xf32>
    %c32 = arith.constant 32 : index
    %c0_216 = arith.constant 0 : index
    %306 = vector.load %arg4[%c32, %c0_216] : memref<49x64xf32, #tpu.memory_space<vmem>>, vector<1x64xf32>
    %307 = vector.broadcast %306 : vector<1x64xf32> to vector<16x64xf32>
    %308 = arith.mulf %305, %307 : vector<16x64xf32>
    %309 = arith.addf %304, %308 : vector<16x64xf32>
    %c12_217 = arith.constant 12 : index
    %c60_218 = arith.constant 60 : index
    %310 = vector.load %arg10[%c12_217, %c60_218] : memref<34x136xf32, #tpu.memory_space<vmem>>, vector<16x64xf32>
    %c33 = arith.constant 33 : index
    %c0_219 = arith.constant 0 : index
    %311 = vector.load %arg4[%c33, %c0_219] : memref<49x64xf32, #tpu.memory_space<vmem>>, vector<1x64xf32>
    %312 = vector.broadcast %311 : vector<1x64xf32> to vector<16x64xf32>
    %313 = arith.mulf %310, %312 : vector<16x64xf32>
    %314 = arith.addf %309, %313 : vector<16x64xf32>
    %c12_220 = arith.constant 12 : index
    %c72_221 = arith.constant 72 : index
    %315 = vector.load %arg10[%c12_220, %c72_221] : memref<34x136xf32, #tpu.memory_space<vmem>>, vector<16x64xf32>
    %c34 = arith.constant 34 : index
    %c0_222 = arith.constant 0 : index
    %316 = vector.load %arg4[%c34, %c0_222] : memref<49x64xf32, #tpu.memory_space<vmem>>, vector<1x64xf32>
    %317 = vector.broadcast %316 : vector<1x64xf32> to vector<16x64xf32>
    %318 = arith.mulf %315, %317 : vector<16x64xf32>
    %319 = arith.addf %314, %318 : vector<16x64xf32>
    %c15_223 = arith.constant 15 : index
    %c0_224 = arith.constant 0 : index
    %320 = vector.load %arg10[%c15_223, %c0_224] : memref<34x136xf32, #tpu.memory_space<vmem>>, vector<16x64xf32>
    %c35 = arith.constant 35 : index
    %c0_225 = arith.constant 0 : index
    %321 = vector.load %arg4[%c35, %c0_225] : memref<49x64xf32, #tpu.memory_space<vmem>>, vector<1x64xf32>
    %322 = vector.broadcast %321 : vector<1x64xf32> to vector<16x64xf32>
    %323 = arith.mulf %320, %322 : vector<16x64xf32>
    %324 = arith.addf %319, %323 : vector<16x64xf32>
    %c15_226 = arith.constant 15 : index
    %c12_227 = arith.constant 12 : index
    %325 = vector.load %arg10[%c15_226, %c12_227] : memref<34x136xf32, #tpu.memory_space<vmem>>, vector<16x64xf32>
    %c36_228 = arith.constant 36 : index
    %c0_229 = arith.constant 0 : index
    %326 = vector.load %arg4[%c36_228, %c0_229] : memref<49x64xf32, #tpu.memory_space<vmem>>, vector<1x64xf32>
    %327 = vector.broadcast %326 : vector<1x64xf32> to vector<16x64xf32>
    %328 = arith.mulf %325, %327 : vector<16x64xf32>
    %329 = arith.addf %324, %328 : vector<16x64xf32>
    %c15_230 = arith.constant 15 : index
    %c24_231 = arith.constant 24 : index
    %330 = vector.load %arg10[%c15_230, %c24_231] : memref<34x136xf32, #tpu.memory_space<vmem>>, vector<16x64xf32>
    %c37 = arith.constant 37 : index
    %c0_232 = arith.constant 0 : index
    %331 = vector.load %arg4[%c37, %c0_232] : memref<49x64xf32, #tpu.memory_space<vmem>>, vector<1x64xf32>
    %332 = vector.broadcast %331 : vector<1x64xf32> to vector<16x64xf32>
    %333 = arith.mulf %330, %332 : vector<16x64xf32>
    %334 = arith.addf %329, %333 : vector<16x64xf32>
    %c15_233 = arith.constant 15 : index
    %c36_234 = arith.constant 36 : index
    %335 = vector.load %arg10[%c15_233, %c36_234] : memref<34x136xf32, #tpu.memory_space<vmem>>, vector<16x64xf32>
    %c38 = arith.constant 38 : index
    %c0_235 = arith.constant 0 : index
    %336 = vector.load %arg4[%c38, %c0_235] : memref<49x64xf32, #tpu.memory_space<vmem>>, vector<1x64xf32>
    %337 = vector.broadcast %336 : vector<1x64xf32> to vector<16x64xf32>
    %338 = arith.mulf %335, %337 : vector<16x64xf32>
    %339 = arith.addf %334, %338 : vector<16x64xf32>
    %c15_236 = arith.constant 15 : index
    %c48_237 = arith.constant 48 : index
    %340 = vector.load %arg10[%c15_236, %c48_237] : memref<34x136xf32, #tpu.memory_space<vmem>>, vector<16x64xf32>
    %c39 = arith.constant 39 : index
    %c0_238 = arith.constant 0 : index
    %341 = vector.load %arg4[%c39, %c0_238] : memref<49x64xf32, #tpu.memory_space<vmem>>, vector<1x64xf32>
    %342 = vector.broadcast %341 : vector<1x64xf32> to vector<16x64xf32>
    %343 = arith.mulf %340, %342 : vector<16x64xf32>
    %344 = arith.addf %339, %343 : vector<16x64xf32>
    %c15_239 = arith.constant 15 : index
    %c60_240 = arith.constant 60 : index
    %345 = vector.load %arg10[%c15_239, %c60_240] : memref<34x136xf32, #tpu.memory_space<vmem>>, vector<16x64xf32>
    %c40 = arith.constant 40 : index
    %c0_241 = arith.constant 0 : index
    %346 = vector.load %arg4[%c40, %c0_241] : memref<49x64xf32, #tpu.memory_space<vmem>>, vector<1x64xf32>
    %347 = vector.broadcast %346 : vector<1x64xf32> to vector<16x64xf32>
    %348 = arith.mulf %345, %347 : vector<16x64xf32>
    %349 = arith.addf %344, %348 : vector<16x64xf32>
    %c15_242 = arith.constant 15 : index
    %c72_243 = arith.constant 72 : index
    %350 = vector.load %arg10[%c15_242, %c72_243] : memref<34x136xf32, #tpu.memory_space<vmem>>, vector<16x64xf32>
    %c41 = arith.constant 41 : index
    %c0_244 = arith.constant 0 : index
    %351 = vector.load %arg4[%c41, %c0_244] : memref<49x64xf32, #tpu.memory_space<vmem>>, vector<1x64xf32>
    %352 = vector.broadcast %351 : vector<1x64xf32> to vector<16x64xf32>
    %353 = arith.mulf %350, %352 : vector<16x64xf32>
    %354 = arith.addf %349, %353 : vector<16x64xf32>
    %c18_245 = arith.constant 18 : index
    %c0_246 = arith.constant 0 : index
    %355 = vector.load %arg10[%c18_245, %c0_246] : memref<34x136xf32, #tpu.memory_space<vmem>>, vector<16x64xf32>
    %c42 = arith.constant 42 : index
    %c0_247 = arith.constant 0 : index
    %356 = vector.load %arg4[%c42, %c0_247] : memref<49x64xf32, #tpu.memory_space<vmem>>, vector<1x64xf32>
    %357 = vector.broadcast %356 : vector<1x64xf32> to vector<16x64xf32>
    %358 = arith.mulf %355, %357 : vector<16x64xf32>
    %359 = arith.addf %354, %358 : vector<16x64xf32>
    %c18_248 = arith.constant 18 : index
    %c12_249 = arith.constant 12 : index
    %360 = vector.load %arg10[%c18_248, %c12_249] : memref<34x136xf32, #tpu.memory_space<vmem>>, vector<16x64xf32>
    %c43 = arith.constant 43 : index
    %c0_250 = arith.constant 0 : index
    %361 = vector.load %arg4[%c43, %c0_250] : memref<49x64xf32, #tpu.memory_space<vmem>>, vector<1x64xf32>
    %362 = vector.broadcast %361 : vector<1x64xf32> to vector<16x64xf32>
    %363 = arith.mulf %360, %362 : vector<16x64xf32>
    %364 = arith.addf %359, %363 : vector<16x64xf32>
    %c18_251 = arith.constant 18 : index
    %c24_252 = arith.constant 24 : index
    %365 = vector.load %arg10[%c18_251, %c24_252] : memref<34x136xf32, #tpu.memory_space<vmem>>, vector<16x64xf32>
    %c44 = arith.constant 44 : index
    %c0_253 = arith.constant 0 : index
    %366 = vector.load %arg4[%c44, %c0_253] : memref<49x64xf32, #tpu.memory_space<vmem>>, vector<1x64xf32>
    %367 = vector.broadcast %366 : vector<1x64xf32> to vector<16x64xf32>
    %368 = arith.mulf %365, %367 : vector<16x64xf32>
    %369 = arith.addf %364, %368 : vector<16x64xf32>
    %c18_254 = arith.constant 18 : index
    %c36_255 = arith.constant 36 : index
    %370 = vector.load %arg10[%c18_254, %c36_255] : memref<34x136xf32, #tpu.memory_space<vmem>>, vector<16x64xf32>
    %c45 = arith.constant 45 : index
    %c0_256 = arith.constant 0 : index
    %371 = vector.load %arg4[%c45, %c0_256] : memref<49x64xf32, #tpu.memory_space<vmem>>, vector<1x64xf32>
    %372 = vector.broadcast %371 : vector<1x64xf32> to vector<16x64xf32>
    %373 = arith.mulf %370, %372 : vector<16x64xf32>
    %374 = arith.addf %369, %373 : vector<16x64xf32>
    %c18_257 = arith.constant 18 : index
    %c48_258 = arith.constant 48 : index
    %375 = vector.load %arg10[%c18_257, %c48_258] : memref<34x136xf32, #tpu.memory_space<vmem>>, vector<16x64xf32>
    %c46 = arith.constant 46 : index
    %c0_259 = arith.constant 0 : index
    %376 = vector.load %arg4[%c46, %c0_259] : memref<49x64xf32, #tpu.memory_space<vmem>>, vector<1x64xf32>
    %377 = vector.broadcast %376 : vector<1x64xf32> to vector<16x64xf32>
    %378 = arith.mulf %375, %377 : vector<16x64xf32>
    %379 = arith.addf %374, %378 : vector<16x64xf32>
    %c18_260 = arith.constant 18 : index
    %c60_261 = arith.constant 60 : index
    %380 = vector.load %arg10[%c18_260, %c60_261] : memref<34x136xf32, #tpu.memory_space<vmem>>, vector<16x64xf32>
    %c47 = arith.constant 47 : index
    %c0_262 = arith.constant 0 : index
    %381 = vector.load %arg4[%c47, %c0_262] : memref<49x64xf32, #tpu.memory_space<vmem>>, vector<1x64xf32>
    %382 = vector.broadcast %381 : vector<1x64xf32> to vector<16x64xf32>
    %383 = arith.mulf %380, %382 : vector<16x64xf32>
    %384 = arith.addf %379, %383 : vector<16x64xf32>
    %c18_263 = arith.constant 18 : index
    %c72_264 = arith.constant 72 : index
    %385 = vector.load %arg10[%c18_263, %c72_264] : memref<34x136xf32, #tpu.memory_space<vmem>>, vector<16x64xf32>
    %c48_265 = arith.constant 48 : index
    %c0_266 = arith.constant 0 : index
    %386 = vector.load %arg4[%c48_265, %c0_266] : memref<49x64xf32, #tpu.memory_space<vmem>>, vector<1x64xf32>
    %387 = vector.broadcast %386 : vector<1x64xf32> to vector<16x64xf32>
    %388 = arith.mulf %385, %387 : vector<16x64xf32>
    %389 = arith.addf %384, %388 : vector<16x64xf32>
    %cst_267 = arith.constant 0.000000e+00 : f32
    %390 = vector.broadcast %cst_267 : f32 to vector<16x4xf32>
    %391 = tpu.concatenate %390, %389, %390 in 1 : vector<16x4xf32>, vector<16x64xf32>, vector<16x4xf32> -> vector<16x72xf32>
    %c0_268 = arith.constant 0 : index
    %c0_269 = arith.constant 0 : index
    %392 = vector.load %arg7[%c0_268, %c0_269] : memref<1x64xf32, #tpu.memory_space<vmem>>, vector<1x64xf32>
    %393 = vector.shape_cast %392 : vector<1x64xf32> to vector<1x64xf32>
    %394 = vector.broadcast %393 : vector<1x64xf32> to vector<16x64xf32>
    %395 = vector.extract_strided_slice %391 {offsets = [0, 1], sizes = [16, 64], strides = [1, 1]} : vector<16x72xf32> to vector<16x64xf32>
    %c0_270 = arith.constant 0 : index
    %c0_271 = arith.constant 0 : index
    %396 = vector.load %arg6[%c0_270, %c0_271] : memref<7x64xf32, #tpu.memory_space<vmem>>, vector<1x64xf32>
    %397 = vector.broadcast %396 : vector<1x64xf32> to vector<16x64xf32>
    %398 = arith.mulf %395, %397 : vector<16x64xf32>
    %399 = arith.addf %394, %398 : vector<16x64xf32>
    %400 = vector.extract_strided_slice %391 {offsets = [0, 2], sizes = [16, 64], strides = [1, 1]} : vector<16x72xf32> to vector<16x64xf32>
    %c1_272 = arith.constant 1 : index
    %c0_273 = arith.constant 0 : index
    %401 = vector.load %arg6[%c1_272, %c0_273] : memref<7x64xf32, #tpu.memory_space<vmem>>, vector<1x64xf32>
    %402 = vector.broadcast %401 : vector<1x64xf32> to vector<16x64xf32>
    %403 = arith.mulf %400, %402 : vector<16x64xf32>
    %404 = arith.addf %399, %403 : vector<16x64xf32>
    %405 = vector.extract_strided_slice %391 {offsets = [0, 3], sizes = [16, 64], strides = [1, 1]} : vector<16x72xf32> to vector<16x64xf32>
    %c2_274 = arith.constant 2 : index
    %c0_275 = arith.constant 0 : index
    %406 = vector.load %arg6[%c2_274, %c0_275] : memref<7x64xf32, #tpu.memory_space<vmem>>, vector<1x64xf32>
    %407 = vector.broadcast %406 : vector<1x64xf32> to vector<16x64xf32>
    %408 = arith.mulf %405, %407 : vector<16x64xf32>
    %409 = arith.addf %404, %408 : vector<16x64xf32>
    %410 = vector.extract_strided_slice %391 {offsets = [0, 4], sizes = [16, 64], strides = [1, 1]} : vector<16x72xf32> to vector<16x64xf32>
    %c3_276 = arith.constant 3 : index
    %c0_277 = arith.constant 0 : index
    %411 = vector.load %arg6[%c3_276, %c0_277] : memref<7x64xf32, #tpu.memory_space<vmem>>, vector<1x64xf32>
    %412 = vector.broadcast %411 : vector<1x64xf32> to vector<16x64xf32>
    %413 = arith.mulf %410, %412 : vector<16x64xf32>
    %414 = arith.addf %409, %413 : vector<16x64xf32>
    %415 = vector.extract_strided_slice %391 {offsets = [0, 5], sizes = [16, 64], strides = [1, 1]} : vector<16x72xf32> to vector<16x64xf32>
    %c4_278 = arith.constant 4 : index
    %c0_279 = arith.constant 0 : index
    %416 = vector.load %arg6[%c4_278, %c0_279] : memref<7x64xf32, #tpu.memory_space<vmem>>, vector<1x64xf32>
    %417 = vector.broadcast %416 : vector<1x64xf32> to vector<16x64xf32>
    %418 = arith.mulf %415, %417 : vector<16x64xf32>
    %419 = arith.addf %414, %418 : vector<16x64xf32>
    %420 = vector.extract_strided_slice %391 {offsets = [0, 6], sizes = [16, 64], strides = [1, 1]} : vector<16x72xf32> to vector<16x64xf32>
    %c5_280 = arith.constant 5 : index
    %c0_281 = arith.constant 0 : index
    %421 = vector.load %arg6[%c5_280, %c0_281] : memref<7x64xf32, #tpu.memory_space<vmem>>, vector<1x64xf32>
    %422 = vector.broadcast %421 : vector<1x64xf32> to vector<16x64xf32>
    %423 = arith.mulf %420, %422 : vector<16x64xf32>
    %424 = arith.addf %419, %423 : vector<16x64xf32>
    %425 = vector.extract_strided_slice %391 {offsets = [0, 7], sizes = [16, 64], strides = [1, 1]} : vector<16x72xf32> to vector<16x64xf32>
    %c6_282 = arith.constant 6 : index
    %c0_283 = arith.constant 0 : index
    %426 = vector.load %arg6[%c6_282, %c0_283] : memref<7x64xf32, #tpu.memory_space<vmem>>, vector<1x64xf32>
    %427 = vector.broadcast %426 : vector<1x64xf32> to vector<16x64xf32>
    %428 = arith.mulf %425, %427 : vector<16x64xf32>
    %429 = arith.addf %424, %428 : vector<16x64xf32>
    %430 = arith.mulf %1, %429 : vector<16x64xf32>
    %431 = arith.addf %430, %1 : vector<16x64xf32>
    %c0_284 = arith.constant 0 : index
    %c0_285 = arith.constant 0 : index
    %c0_286 = arith.constant 0 : index
    %432 = vector.load %arg8[%c0_284, %c0_285, %c0_286] : memref<1x16x64xf32, #tpu.memory_space<vmem>>, vector<1x16x64xf32>
    %433 = vector.shape_cast %432 : vector<1x16x64xf32> to vector<16x64xf32>
    %434 = vector.shape_cast %431 : vector<16x64xf32> to vector<1x16x64xf32>
    tpu.vector_store %arg8[%c0_284, %c0_285, %c0_286], %434 {strides = array<i32>} : memref<1x16x64xf32, #tpu.memory_space<vmem>>, vector<1x16x64xf32>,
    return
  }
  func.func @transform_0(%arg0: i32) -> (i32, i32, i32) {
    %c0_i32 = arith.constant 0 : i32
    %c0_i32_0 = arith.constant 0 : i32
    %c0_i32_1 = arith.constant 0 : i32
    return %arg0, %c0_i32, %c0_i32_0 : i32, i32, i32
  }
  func.func @transform_1(%arg0: i32) -> (i32, i32) {
    %c0_i32 = arith.constant 0 : i32
    %c0_i32_0 = arith.constant 0 : i32
    %c0_i32_1 = arith.constant 0 : i32
    return %c0_i32, %c0_i32_0 : i32, i32
  }
  func.func @transform_2(%arg0: i32) -> (i32, i32) {
    %c0_i32 = arith.constant 0 : i32
    %c0_i32_0 = arith.constant 0 : i32
    %c0_i32_1 = arith.constant 0 : i32
    return %c0_i32, %c0_i32_0 : i32, i32
  }
  func.func @transform_3(%arg0: i32) -> (i32, i32) {
    %c0_i32 = arith.constant 0 : i32
    %c0_i32_0 = arith.constant 0 : i32
    %c0_i32_1 = arith.constant 0 : i32
    return %c0_i32, %c0_i32_0 : i32, i32
  }
  func.func @transform_4(%arg0: i32) -> (i32, i32) {
    %c0_i32 = arith.constant 0 : i32
    %c0_i32_0 = arith.constant 0 : i32
    %c0_i32_1 = arith.constant 0 : i32
    return %c0_i32, %c0_i32_0 : i32, i32
  }
  func.func @transform_5(%arg0: i32) -> (i32, i32) {
    %c0_i32 = arith.constant 0 : i32
    %c0_i32_0 = arith.constant 0 : i32
    %c0_i32_1 = arith.constant 0 : i32
    return %c0_i32, %c0_i32_0 : i32, i32
  }
  func.func @transform_6(%arg0: i32) -> (i32, i32) {
    %c0_i32 = arith.constant 0 : i32
    %c0_i32_0 = arith.constant 0 : i32
    %c0_i32_1 = arith.constant 0 : i32
    return %c0_i32, %c0_i32_0 : i32, i32
  }
  func.func @transform_7(%arg0: i32) -> (i32, i32, i32) {
    %c0_i32 = arith.constant 0 : i32
    %c0_i32_0 = arith.constant 0 : i32
    %c0_i32_1 = arith.constant 0 : i32
    return %arg0, %c0_i32, %c0_i32_0 : i32, i32, i32
  }
}

</mosaic_0001>

<llo_original>
// kernel: tpu_custom_call.1
$region0: #{tpu_custom_call.1}
  #allocation0 [shape = 'u32[]', space=smem, size = 0x4, offset = 0x4, fixed_abs, tag = 'smem constant byte address 0x4 - core index']
  #allocation1 [shape = 'u32[144,128]{1,0:T(1,128)}', space=vmem, size = 0x12000, scoped, tag = 'internal scratch']
  #allocation2 [shape = 'f32[20,80]{1,0:T(8,128)}', space=vmem, size = 0x3000, scoped, tag = 'scratch operand']
  #allocation3 [shape = 'f32[34,136]{1,0:T(8,128)}', space=vmem, size = 0xa000, scoped, tag = 'scratch operand']
  %s0 = inlined_call_operand.hbm [shape: f32[2,16,64], index: 0, kind: input, shape index: {}]
  %s1 = inlined_call_operand.hbm [shape: f32[25,64], index: 1, kind: input, shape index: {}]
  %s2 = inlined_call_operand.vmem [shape: f32[1,64], index: 2, kind: input, shape index: {}]
  %s3 = inlined_call_operand.hbm [shape: f32[49,64], index: 3, kind: input, shape index: {}]
  %s4 = inlined_call_operand.vmem [shape: f32[1,64], index: 4, kind: input, shape index: {}]
  %s5 = inlined_call_operand.vmem [shape: f32[7,64], index: 5, kind: input, shape index: {}]
  %s6 = inlined_call_operand.vmem [shape: f32[1,64], index: 6, kind: input, shape index: {}]
  %s7 = inlined_call_operand.hbm [shape: f32[2,16,64], index: 7, kind: output, shape index: {}]
  %s8 = sld [smem:[#allocation0]]
  $region73: #{tpu_custom_call.1} parent=0
    _
  %s10 = ssub.s32 1, %s8
  %s11 = scalar_select 0, %s10, %s8
  $region1: #{tpu_custom_call.1} parent=0
    #allocation4 [shape = 'u8[16384]{0}', space=vmem, size = 0x4000, scoped, tag = 'input window, operand 0']
    #allocation5 [shape = 's32[2]{0}', space=sflag, size = 0x8, scoped, tag = 'scoped memory for tpu_custom_call.1']
    #allocation6 [shape = 's32[2]{0}', space=sflag, size = 0x8, scoped, tag = 'scoped memory for tpu_custom_call.1']
    #allocation7 [shape = 'u8[16384]{0}', space=vmem, size = 0x4000, scoped, tag = 'input window, operand 1, single buffered']
    #allocation8 [shape = 's32[1]{0}', space=sflag, size = 0x4, scoped, tag = 'scoped memory for tpu_custom_call.1']
    #allocation9 [shape = 'u8[28672]{0}', space=vmem, size = 0x7000, scoped, tag = 'input window, operand 3, single buffered']
    #allocation10 [shape = 'u8[16384]{0}', space=vmem, size = 0x4000, scoped, tag = 'output window, operand 0']
    %12 = vsyncpa [#allocation5], 0
    %s13 = scalar_lea.sflag [#allocation5], 1
    %14 = vsyncpa %s13, 0
    %15 = vsyncpa [#allocation8], 0
    %16 = vsyncpa [#allocation6], 0
    %s17 = scalar_lea.sflag [#allocation6], 1
    %18 = vsyncpa %s17, 0
    loop: start=0, step=1, limit=4
    $region2: #{tpu_custom_call.1} parent=1 // loop_pre_header
      _
    $region3: #{tpu_custom_call.1} parent=1 // loop_header
      %s20 = sphi 0, %s24
      %p21 = scmp.ge.s32.totalorder %s20, 4
      %s30 = sphi 0, %s32
      %s33 = sphi 0, %s30
      %s34 = sphi 0, %s33
      %s50 = sphi 0, %s34
      %s54 = sphi 0, %s54
      %s56 = sphi 0, %s54
      %s57 = sphi 0, %s56
      %s71 = sphi 0, %s57
      %s75 = sphi 0, %s75
      %s77 = sphi 0, %s75
      %s78 = sphi 0, %s77
      %s92 = sphi 0, %s78
      %s96 = sphi 0, %s96
      %s98 = sphi 0, %s96
      %s99 = sphi 0, %s98
      %s113 = sphi 0, %s99
      %s117 = sphi 0, %s117
      %s119 = sphi 0, %s117
      %s120 = sphi 0, %s119
      %s134 = sphi 0, %s120
      %s138 = sphi 0, %s138
      %s140 = sphi 0, %s138
      %s141 = sphi 0, %s140
      %s155 = sphi 0, %s141
      %s159 = sphi 0, %s159
      %s161 = sphi 0, %s159
      %s162 = sphi 0, %s161
      %s176 = sphi 0, %s162
      %s182 = sphi 0, %s184
      %s185 = sphi 0, %s182
      %s186 = sphi 0, %s185
      %s202 = sphi 0, %s186
    $region4: #{tpu_custom_call.1} parent=1 // loop_header_branch
      %23 = sbr.rel (%p21) target = $region8
    $region5: #{tpu_custom_call.1} parent=1 // loop_body
      %s25 = ssub.s32 %s20, 1
      %s26 = ssub.s32 %s20, 2
      %s27 = sadd.s32 %s20, 1
      %s28 = ssub.s32 %s20, %s27
      %p29 = scmp.eq.s32.totalorder %s28, 0
      %s31 = sadd.s32 %s30, 1
      %s32 = scalar_select %p29, %s30, %s31
      %p35 = pneg %p29
      %p36 = scmp.eq.s32.totalorder %s20, 1
      %p37 = por %p35, %p36
      %p38 = scmp.ne.s32.totalorder %s30, %s33
      %p39 = scmp.eq.s32.totalorder %s20, 0
      %p40 = por %p38, %p39
      %p41 = scmp.ne.s32.totalorder %s30, %s33
      %p42 = scmp.eq.s32.totalorder %s25, 1
      %p43 = por %p41, %p42
      %p44 = scmp.ne.s32.totalorder %s33, %s34
      %p45 = scmp.eq.s32.totalorder %s25, 0
      %p46 = por %p44, %p45
      %p47 = scmp.ne.s32.totalorder %s33, %s34
      %p48 = scmp.eq.s32.totalorder %s26, 1
      %p49 = por %p47, %p48
      %p51 = scmp.ne.s32.totalorder %s34, %s50
      %p52 = scmp.eq.s32.totalorder %s26, 0
      %p53 = por %p51, %p52
      %s55 = sadd.s32 %s54, 1
      %p58 = scmp.eq.s32.totalorder %s20, 1
      %p59 = scmp.ne.s32.totalorder %s54, %s56
      %p60 = scmp.eq.s32.totalorder %s20, 0
      %p61 = por %p59, %p60
      %p62 = scmp.ne.s32.totalorder %s54, %s56
      %p63 = scmp.eq.s32.totalorder %s25, 1
      %p64 = por %p62, %p63
      %p65 = scmp.ne.s32.totalorder %s56, %s57
      %p66 = scmp.eq.s32.totalorder %s25, 0
      %p67 = por %p65, %p66
      %p68 = scmp.ne.s32.totalorder %s56, %s57
      %p69 = scmp.eq.s32.totalorder %s26, 1
      %p70 = por %p68, %p69
      %p72 = scmp.ne.s32.totalorder %s57, %s71
      %p73 = scmp.eq.s32.totalorder %s26, 0
      %p74 = por %p72, %p73
      %s76 = sadd.s32 %s75, 1
      %p79 = scmp.eq.s32.totalorder %s20, 1
      %p80 = scmp.ne.s32.totalorder %s75, %s77
      %p81 = scmp.eq.s32.totalorder %s20, 0
      %p82 = por %p80, %p81
      %p83 = scmp.ne.s32.totalorder %s75, %s77
      %p84 = scmp.eq.s32.totalorder %s25, 1
      %p85 = por %p83, %p84
      %p86 = scmp.ne.s32.totalorder %s77, %s78
      %p87 = scmp.eq.s32.totalorder %s25, 0
      %p88 = por %p86, %p87
      %p89 = scmp.ne.s32.totalorder %s77, %s78
      %p90 = scmp.eq.s32.totalorder %s26, 1
      %p91 = por %p89, %p90
      %p93 = scmp.ne.s32.totalorder %s78, %s92
      %p94 = scmp.eq.s32.totalorder %s26, 0
      %p95 = por %p93, %p94
      %s97 = sadd.s32 %s96, 1
      %p100 = scmp.eq.s32.totalorder %s20, 1
      %p101 = scmp.ne.s32.totalorder %s96, %s98
      %p102 = scmp.eq.s32.totalorder %s20, 0
      %p103 = por %p101, %p102
      %p104 = scmp.ne.s32.totalorder %s96, %s98
      %p105 = scmp.eq.s32.totalorder %s25, 1
      %p106 = por %p104, %p105
      %p107 = scmp.ne.s32.totalorder %s98, %s99
      %p108 = scmp.eq.s32.totalorder %s25, 0
      %p109 = por %p107, %p108
      %p110 = scmp.ne.s32.totalorder %s98, %s99
      %p111 = scmp.eq.s32.totalorder %s26, 1
      %p112 = por %p110, %p111
      %p114 = scmp.ne.s32.totalorder %s99, %s113
      %p115 = scmp.eq.s32.totalorder %s26, 0
      %p116 = por %p114, %p115
      %s118 = sadd.s32 %s117, 1
      %p121 = scmp.eq.s32.totalorder %s20, 1
      %p122 = scmp.ne.s32.totalorder %s117, %s119
      %p123 = scmp.eq.s32.totalorder %s20, 0
      %p124 = por %p122, %p123
      %p125 = scmp.ne.s32.totalorder %s117, %s119
      %p126 = scmp.eq.s32.totalorder %s25, 1
      %p127 = por %p125, %p126
      %p128 = scmp.ne.s32.totalorder %s119, %s120
      %p129 = scmp.eq.s32.totalorder %s25, 0
      %p130 = por %p128, %p129
      %p131 = scmp.ne.s32.totalorder %s119, %s120
      %p132 = scmp.eq.s32.totalorder %s26, 1
      %p133 = por %p131, %p132
      %p135 = scmp.ne.s32.totalorder %s120, %s134
      %p136 = scmp.eq.s32.totalorder %s26, 0
      %p137 = por %p135, %p136
      %s139 = sadd.s32 %s138, 1
      %p142 = scmp.eq.s32.totalorder %s20, 1
      %p143 = scmp.ne.s32.totalorder %s138, %s140
      %p144 = scmp.eq.s32.totalorder %s20, 0
      %p145 = por %p143, %p144
      %p146 = scmp.ne.s32.totalorder %s138, %s140
      %p147 = scmp.eq.s32.totalorder %s25, 1
      %p148 = por %p146, %p147
      %p149 = scmp.ne.s32.totalorder %s140, %s141
      %p150 = scmp.eq.s32.totalorder %s25, 0
      %p151 = por %p149, %p150
      %p152 = scmp.ne.s32.totalorder %s140, %s141
      %p153 = scmp.eq.s32.totalorder %s26, 1
      %p154 = por %p152, %p153
      %p156 = scmp.ne.s32.totalorder %s141, %s155
      %p157 = scmp.eq.s32.totalorder %s26, 0
      %p158 = por %p156, %p157
      %s160 = sadd.s32 %s159, 1
      %p163 = scmp.eq.s32.totalorder %s20, 1
      %p164 = scmp.ne.s32.totalorder %s159, %s161
      %p165 = scmp.eq.s32.totalorder %s20, 0
      %p166 = por %p164, %p165
      %p167 = scmp.ne.s32.totalorder %s159, %s161
      %p168 = scmp.eq.s32.totalorder %s25, 1
      %p169 = por %p167, %p168
      %p170 = scmp.ne.s32.totalorder %s161, %s162
      %p171 = scmp.eq.s32.totalorder %s25, 0
      %p172 = por %p170, %p171
      %p173 = scmp.ne.s32.totalorder %s161, %s162
      %p174 = scmp.eq.s32.totalorder %s26, 1
      %p175 = por %p173, %p174
      %p177 = scmp.ne.s32.totalorder %s162, %s176
      %p178 = scmp.eq.s32.totalorder %s26, 0
      %p179 = por %p177, %p178
      %s180 = ssub.s32 %s20, %s27
      %p181 = scmp.eq.s32.totalorder %s180, 0
      %s183 = sadd.s32 %s182, 1
      %s184 = scalar_select %p181, %s182, %s183
      %p187 = pneg %p181
      %p188 = scmp.eq.s32.totalorder %s20, 1
      %p189 = por %p187, %p188
      %p190 = scmp.ne.s32.totalorder %s182, %s185
      %p191 = scmp.eq.s32.totalorder %s20, 0
      %p192 = por %p190, %p191
      %p193 = scmp.ne.s32.totalorder %s182, %s185
      %p194 = scmp.eq.s32.totalorder %s25, 1
      %p195 = por %p193, %p194
      %p196 = scmp.ne.s32.totalorder %s185, %s186
      %p197 = scmp.eq.s32.totalorder %s25, 0
      %p198 = por %p196, %p197
      %p199 = scmp.ne.s32.totalorder %s185, %s186
      %p200 = scmp.eq.s32.totalorder %s26, 1
      %p201 = por %p199, %p200
      %p203 = scmp.ne.s32.totalorder %s186, %s202
      %p204 = scmp.eq.s32.totalorder %s26, 0
      %p205 = por %p203, %p204
      %p206 = scmp.le.s32.totalorder 1, %s20
      %p207 = scmp.lt.s32.totalorder %s20, 3
      %p208 = pnand %p206, %p207
      %p209 = pneg %p208
      // Predicated region
      $region9: #{tpu_custom_call.1} parent=5 // pred_check
        _
      $region10: #{tpu_custom_call.1} parent=5 // pred_check_branch
        %211 = sbr.rel (%p208) target = $region12
      $region11: #{tpu_custom_call.1} parent=5 // pred_region
        %s212 = ssub.s32 %s20, 1
        // Predicated region
        $region13: #{tpu_custom_call.1} parent=11 // pred_check
          %p213 = pneg %p67
        $region14: #{tpu_custom_call.1} parent=11 // pred_check_branch
          %215 = sbr.rel (%p213) target = $region16
        $region15: #{tpu_custom_call.1} parent=11 // pred_region
          %s217 = ssub.s32 512, 512
          %218 = vsyncadd [#allocation8], %s217
          %s219 = sshll.u32 [#allocation7], 4
          %s220 = int_to_ptr.vmem [resolvable:$true] %s219
          %225 = dma.hbm_to_vmem [thread:$0]  %s1, 512, %s220, [#allocation8], 128, 128, 8
        $region16: #{tpu_custom_call.1} parent=11 // pred_fallthru
          _
        // Predicated region
        $region17: #{tpu_custom_call.1} parent=11 // pred_check
          %p226 = pneg %p88
        $region18: #{tpu_custom_call.1} parent=11 // pred_check_branch
          %228 = sbr.rel (%p226) target = $region20
        $region19: #{tpu_custom_call.1} parent=11 // pred_region
          _
        $region20: #{tpu_custom_call.1} parent=11 // pred_fallthru
          _
        // Predicated region
        $region21: #{tpu_custom_call.1} parent=11 // pred_check
          %p229 = pneg %p109
        $region22: #{tpu_custom_call.1} parent=11 // pred_check_branch
          %231 = sbr.rel (%p229) target = $region24
        $region23: #{tpu_custom_call.1} parent=11 // pred_region
          %s233 = ssub.s32 896, 896
          %234 = vsyncadd [#allocation8], %s233
          %s235 = sshll.u32 [#allocation9], 4
          %s236 = int_to_ptr.vmem [resolvable:$true] %s235
          %241 = dma.hbm_to_vmem [thread:$0]  %s3, 896, %s236, [#allocation8], 128, 128, 8
        $region24: #{tpu_custom_call.1} parent=11 // pred_fallthru
          _
        // Predicated region
        $region25: #{tpu_custom_call.1} parent=11 // pred_check
          %p242 = pneg %p130
        $region26: #{tpu_custom_call.1} parent=11 // pred_check_branch
          %244 = sbr.rel (%p242) target = $region28
        $region27: #{tpu_custom_call.1} parent=11 // pred_region
          _
        $region28: #{tpu_custom_call.1} parent=11 // pred_fallthru
          _
        // Predicated region
        $region29: #{tpu_custom_call.1} parent=11 // pred_check
          %p245 = pneg %p151
        $region30: #{tpu_custom_call.1} parent=11 // pred_check_branch
          %247 = sbr.rel (%p245) target = $region32
        $region31: #{tpu_custom_call.1} parent=11 // pred_region
          _
        $region32: #{tpu_custom_call.1} parent=11 // pred_fallthru
          _
        // Predicated region
        $region33: #{tpu_custom_call.1} parent=11 // pred_check
          %p248 = pneg %p172
        $region34: #{tpu_custom_call.1} parent=11 // pred_check_branch
          %250 = sbr.rel (%p248) target = $region36
        $region35: #{tpu_custom_call.1} parent=11 // pred_region
          _
        $region36: #{tpu_custom_call.1} parent=11 // pred_fallthru
          _
      $region12: #{tpu_custom_call.1} parent=5 // pred_fallthru
        _
      %p251 = scmp.lt.s32.totalorder %s20, 2
      // Predicated region
      $region37: #{tpu_custom_call.1} parent=5 // pred_check
        %p252 = pneg %p251
      $region38: #{tpu_custom_call.1} parent=5 // pred_check_branch
        %254 = sbr.rel (%p252) target = $region40
      $region39: #{tpu_custom_call.1} parent=5 // pred_region
        // Predicated region
        $region41: #{tpu_custom_call.1} parent=39 // pred_check
          %p255 = pneg %p40
        $region42: #{tpu_custom_call.1} parent=39 // pred_check_branch
          %257 = sbr.rel (%p255) target = $region44
        $region43: #{tpu_custom_call.1} parent=39 // pred_region
          %s258 = sand.u32 %s30, 1
          %s259 = scalar_lea.sflag [#allocation5], %s258
          %s260 = sand.u32 %s30, 1
          %s261 = smul.addr %s260, 16
          %s262 = scalar_lea.vmem [#allocation4], %s261
          %s264 = ssub.s32 256, 256
          %265 = vsyncadd %s259, %s264
          %s266 = smul.addr %s20, 2
          %s267 = smul.addr %s266, 128
          %s268 = scalar_lea.hbm %s0, %s267
          %s269 = sshll.u32 %s262, 4
          %s270 = int_to_ptr.vmem [resolvable:$true] %s269
          %275 = dma.hbm_to_vmem [thread:$0]  %s268, 256, %s270, %s259, 128, 128, 8
        $region44: #{tpu_custom_call.1} parent=39 // pred_fallthru
          _
      $region40: #{tpu_custom_call.1} parent=5 // pred_fallthru
        _
      %p276 = scmp.le.s32.totalorder 1, %s20
      %p277 = scmp.lt.s32.totalorder %s20, 3
      %p278 = pnand %p276, %p277
      %p279 = pneg %p278
      // Predicated region
      $region45: #{tpu_custom_call.1} parent=5 // pred_check
        _
      $region46: #{tpu_custom_call.1} parent=5 // pred_check_branch
        %281 = sbr.rel (%p278) target = $region48
      $region47: #{tpu_custom_call.1} parent=5 // pred_region
        %s282 = ssub.s32 %s20, 1
        %s283 = sand.u32 %s33, 1
        %s284 = scalar_lea.sflag [#allocation5], %s283
        %s285 = sand.u32 %s33, 1
        %s286 = smul.addr %s285, 16
        %s287 = scalar_lea.vmem [#allocation4], %s286
        // Predicated region
        $region49: #{tpu_custom_call.1} parent=47 // pred_check
          %p288 = pneg %p46
        $region50: #{tpu_custom_call.1} parent=47 // pred_check_branch
          %290 = sbr.rel (%p288) target = $region52
        $region51: #{tpu_custom_call.1} parent=47 // pred_region
          %291 = dma.done %s284, 256
        $region52: #{tpu_custom_call.1} parent=47 // pred_fallthru
          _
        // Predicated region
        $region53: #{tpu_custom_call.1} parent=47 // pred_check
          %p292 = pneg %p67
        $region54: #{tpu_custom_call.1} parent=47 // pred_check_branch
          %294 = sbr.rel (%p292) target = $region56
        $region55: #{tpu_custom_call.1} parent=47 // pred_region
          %295 = dma.done [#allocation8], 512
        $region56: #{tpu_custom_call.1} parent=47 // pred_fallthru
          _
        // Predicated region
        $region57: #{tpu_custom_call.1} parent=47 // pred_check
          %p296 = pneg %p109
        $region58: #{tpu_custom_call.1} parent=47 // pred_check_branch
          %298 = sbr.rel (%p296) target = $region60
        $region59: #{tpu_custom_call.1} parent=47 // pred_region
          %299 = dma.done [#allocation8], 896
        $region60: #{tpu_custom_call.1} parent=47 // pred_fallthru
          _
        %s300 = sand.u32 %s33, 1
        %s301 = scalar_lea.sflag [#allocation5], %s300
        %s302 = sand.u32 %s33, 1
        %s303 = smul.addr %s302, 16
        %s304 = scalar_lea.vmem [#allocation4], %s303
        %p305 = pneg %p46
        %p306 = pneg %p43
        %p307 = pneg %p67
        %p308 = pneg %p64
        %p309 = pneg %p88
        %p310 = pneg %p85
        %p311 = pneg %p109
        %p312 = pneg %p106
        %p313 = pneg %p130
        %p314 = pneg %p127
        %p315 = pneg %p151
        %p316 = pneg %p148
        %p317 = pneg %p172
        %p318 = pneg %p169
        %p319 = pneg %p198
        %p320 = pneg %p195
        %s321 = sand.u32 %s185, 1
        %s322 = scalar_lea.sflag [#allocation6], %s321
        %s323 = sand.u32 %s185, 1
        %s324 = smul.addr %s323, 16
        %s325 = scalar_lea.vmem [#allocation10], %s324
        %v326 = vld [vmem:[%s287] sm:$0xff]
        %v327 = vld [vmem:[%s287 + $0x8] sm:$0xff]
        %vm328 = vcmask 648192
        %329 = vst.msk [vmem:[#allocation2] sm:$0x3] %vm328, 0.0
        %330 = vst.msk [vmem:[#allocation2 + $0x12] sm:$0x3] %vm328, 0.0
        %333 = vrot.lane.b32.xlu0 %v326, 8
        %v334 = vpop.permute.xlu0 %333
        %335 = vrot.lane.b32.xlu0 %v327, 8
        %v336 = vpop.permute.xlu0 %335
        %vm339 = vcmask 64512
        %v340 = vsel %vm339, 0.0, %v334
        %v341 = vsel %vm339, 0.0, %v336
        %vm342 = vcmask 588800
        %v343 = vsel %vm342, %v340, 0.0
        %v344 = vsel %vm342, %v341, 0.0
        %vm345 = vcmask 654336
        %346 = vst.msk [vmem:[#allocation2 + $0x2] sm:$0xff] %vm345, %v343
        %347 = vst.msk [vmem:[#allocation2 + $0xa] sm:$0xff] %vm345, %v344
        %v348 = vld [vmem:[%s2] sm:$0x1]
        %v350 = vlaneseq
        %v351 = vshrl.u32 %v350, 7
        %v352 = vsub.s32 0, %v351
        %v353 = vrot.slane %v348, %v352
        %v355 = vld [vmem:[#allocation2] sm:$0xff]
        %v356 = vld [vmem:[#allocation2 + $0x8] sm:$0xff]
        %v357 = vld [vmem:[#allocation7] sm:$0x1]
        %v358 = vlaneseq
        %v359 = vshrl.u32 %v358, 7
        %v360 = vsub.s32 0, %v359
        %v361 = vrot.slane %v357, %v360
        %v362 = vmul.f32 %v355, %v361
        %v363 = vmul.f32 %v356, %v361
        %v364 = vadd.f32 %v353, %v362
        %v365 = vadd.f32 %v353, %v363
        %v366 = vld [vmem:[#allocation7 + $0x1] sm:$0x1]
        %v367 = vlaneseq
        %v368 = vshrl.u32 %v367, 7
        %v369 = vsub.s32 0, %v368
        %v370 = vrot.slane %v366, %v369
        %372 = vrot.lane.b32.xlu0 %v370, 4
        %v373 = vpop.permute.xlu0 %372
        %v375 = vmul.f32 %v355, %v373
        %v376 = vmul.f32 %v356, %v373
        %379 = vrot.lane.b32.xlu0 %v375, 124
        %v380 = vpop.permute.xlu0 %379
        %381 = vrot.lane.b32.xlu0 %v376, 124
        %v382 = vpop.permute.xlu0 %381
        %v385 = vadd.f32 %v364, %v380
        %v386 = vadd.f32 %v365, %v382
        %v387 = vld [vmem:[#allocation7 + $0x2] sm:$0x1]
        %v388 = vlaneseq
        %v389 = vshrl.u32 %v388, 7
        %v390 = vsub.s32 0, %v389
        %v391 = vrot.slane %v387, %v390
        %393 = vrot.lane.b32.xlu0 %v391, 8
        %v394 = vpop.permute.xlu0 %393
        %v396 = vmul.f32 %v355, %v394
        %v397 = vmul.f32 %v356, %v394
        %400 = vrot.lane.b32.xlu0 %v396, 120
        %v401 = vpop.permute.xlu0 %400
        %402 = vrot.lane.b32.xlu0 %v397, 120
        %v403 = vpop.permute.xlu0 %402
        %v406 = vadd.f32 %v385, %v401
        %v407 = vadd.f32 %v386, %v403
        %v408 = vld [vmem:[#allocation7 + $0x3] sm:$0x1]
        %v409 = vlaneseq
        %v410 = vshrl.u32 %v409, 7
        %v411 = vsub.s32 0, %v410
        %v412 = vrot.slane %v408, %v411
        %414 = vrot.lane.b32.xlu0 %v412, 12
        %v415 = vpop.permute.xlu0 %414
        %v417 = vmul.f32 %v355, %v415
        %v418 = vmul.f32 %v356, %v415
        %421 = vrot.lane.b32.xlu0 %v417, 116
        %v422 = vpop.permute.xlu0 %421
        %423 = vrot.lane.b32.xlu0 %v418, 116
        %v424 = vpop.permute.xlu0 %423
        %v427 = vadd.f32 %v406, %v422
        %v428 = vadd.f32 %v407, %v424
        %v429 = vld [vmem:[#allocation7 + $0x4] sm:$0x1]
        %v430 = vlaneseq
        %v431 = vshrl.u32 %v430, 7
        %v432 = vsub.s32 0, %v431
        %v433 = vrot.slane %v429, %v432
        %435 = vrot.lane.b32.xlu0 %v433, 16
        %v436 = vpop.permute.xlu0 %435
        %v438 = vmul.f32 %v355, %v436
        %v439 = vmul.f32 %v356, %v436
        %442 = vrot.lane.b32.xlu0 %v438, 112
        %v443 = vpop.permute.xlu0 %442
        %444 = vrot.lane.b32.xlu0 %v439, 112
        %v445 = vpop.permute.xlu0 %444
        %v448 = vadd.f32 %v427, %v443
        %v449 = vadd.f32 %v428, %v445
        %v450 = vld [vmem:[#allocation2 + $0x1] sm:$0xff]
        %v451 = vld [vmem:[#allocation2 + $0x9] sm:$0xff]
        %v452 = vld [vmem:[#allocation7 + $0x5] sm:$0x1]
        %v453 = vlaneseq
        %v454 = vshrl.u32 %v453, 7
        %v455 = vsub.s32 0, %v454
        %v456 = vrot.slane %v452, %v455
        %v457 = vmul.f32 %v450, %v456
        %v458 = vmul.f32 %v451, %v456
        %v459 = vadd.f32 %v448, %v457
        %v460 = vadd.f32 %v449, %v458
        %v461 = vld [vmem:[#allocation7 + $0x6] sm:$0x1]
        %v462 = vlaneseq
        %v463 = vshrl.u32 %v462, 7
        %v464 = vsub.s32 0, %v463
        %v465 = vrot.slane %v461, %v464
        %467 = vrot.lane.b32.xlu0 %v465, 4
        %v468 = vpop.permute.xlu0 %467
        %v470 = vmul.f32 %v450, %v468
        %v471 = vmul.f32 %v451, %v468
        %474 = vrot.lane.b32.xlu0 %v470, 124
        %v475 = vpop.permute.xlu0 %474
        %476 = vrot.lane.b32.xlu0 %v471, 124
        %v477 = vpop.permute.xlu0 %476
        %v480 = vadd.f32 %v459, %v475
        %v481 = vadd.f32 %v460, %v477
        %v482 = vld [vmem:[#allocation7 + $0x7] sm:$0x1]
        %v483 = vlaneseq
        %v484 = vshrl.u32 %v483, 7
        %v485 = vsub.s32 0, %v484
        %v486 = vrot.slane %v482, %v485
        %488 = vrot.lane.b32.xlu0 %v486, 8
        %v489 = vpop.permute.xlu0 %488
        %v491 = vmul.f32 %v450, %v489
        %v492 = vmul.f32 %v451, %v489
        %495 = vrot.lane.b32.xlu0 %v491, 120
        %v496 = vpop.permute.xlu0 %495
        %497 = vrot.lane.b32.xlu0 %v492, 120
        %v498 = vpop.permute.xlu0 %497
        %v501 = vadd.f32 %v480, %v496
        %v502 = vadd.f32 %v481, %v498
        %v503 = vld [vmem:[#allocation7 + $0x8] sm:$0x1]
        %v504 = vlaneseq
        %v505 = vshrl.u32 %v504, 7
        %v506 = vsub.s32 0, %v505
        %v507 = vrot.slane %v503, %v506
        %509 = vrot.lane.b32.xlu0 %v507, 12
        %v510 = vpop.permute.xlu0 %509
        %v512 = vmul.f32 %v450, %v510
        %v513 = vmul.f32 %v451, %v510
        %516 = vrot.lane.b32.xlu0 %v512, 116
        %v517 = vpop.permute.xlu0 %516
        %518 = vrot.lane.b32.xlu0 %v513, 116
        %v519 = vpop.permute.xlu0 %518
        %v522 = vadd.f32 %v501, %v517
        %v523 = vadd.f32 %v502, %v519
        %v524 = vld [vmem:[#allocation7 + $0x9] sm:$0x1]
        %v525 = vlaneseq
        %v526 = vshrl.u32 %v525, 7
        %v527 = vsub.s32 0, %v526
        %v528 = vrot.slane %v524, %v527
        %530 = vrot.lane.b32.xlu0 %v528, 16
        %v531 = vpop.permute.xlu0 %530
        %v533 = vmul.f32 %v450, %v531
        %v534 = vmul.f32 %v451, %v531
        %537 = vrot.lane.b32.xlu0 %v533, 112
        %v538 = vpop.permute.xlu0 %537
        %539 = vrot.lane.b32.xlu0 %v534, 112
        %v540 = vpop.permute.xlu0 %539
        %v543 = vadd.f32 %v522, %v538
        %v544 = vadd.f32 %v523, %v540
        %v545 = vld [vmem:[#allocation2 + $0x2] sm:$0xff]
        %v546 = vld [vmem:[#allocation2 + $0xa] sm:$0xff]
        %v547 = vld [vmem:[#allocation7 + $0xa] sm:$0x1]
        %v548 = vlaneseq
        %v549 = vshrl.u32 %v548, 7
        %v550 = vsub.s32 0, %v549
        %v551 = vrot.slane %v547, %v550
        %v552 = vmul.f32 %v545, %v551
        %v553 = vmul.f32 %v546, %v551
        %v554 = vadd.f32 %v543, %v552
        %v555 = vadd.f32 %v544, %v553
        %v556 = vld [vmem:[#allocation7 + $0xb] sm:$0x1]
        %v557 = vlaneseq
        %v558 = vshrl.u32 %v557, 7
        %v559 = vsub.s32 0, %v558
        %v560 = vrot.slane %v556, %v559
        %562 = vrot.lane.b32.xlu0 %v560, 4
        %v563 = vpop.permute.xlu0 %562
        %v565 = vmul.f32 %v545, %v563
        %v566 = vmul.f32 %v546, %v563
        %569 = vrot.lane.b32.xlu0 %v565, 124
        %v570 = vpop.permute.xlu0 %569
        %571 = vrot.lane.b32.xlu0 %v566, 124
        %v572 = vpop.permute.xlu0 %571
        %v575 = vadd.f32 %v554, %v570
        %v576 = vadd.f32 %v555, %v572
        %v577 = vld [vmem:[#allocation7 + $0xc] sm:$0x1]
        %v578 = vlaneseq
        %v579 = vshrl.u32 %v578, 7
        %v580 = vsub.s32 0, %v579
        %v581 = vrot.slane %v577, %v580
        %583 = vrot.lane.b32.xlu0 %v581, 8
        %v584 = vpop.permute.xlu0 %583
        %v586 = vmul.f32 %v545, %v584
        %v587 = vmul.f32 %v546, %v584
        %590 = vrot.lane.b32.xlu0 %v586, 120
        %v591 = vpop.permute.xlu0 %590
        %592 = vrot.lane.b32.xlu0 %v587, 120
        %v593 = vpop.permute.xlu0 %592
        %v596 = vadd.f32 %v575, %v591
        %v597 = vadd.f32 %v576, %v593
        %v598 = vld [vmem:[#allocation7 + $0xd] sm:$0x1]
        %v599 = vlaneseq
        %v600 = vshrl.u32 %v599, 7
        %v601 = vsub.s32 0, %v600
        %v602 = vrot.slane %v598, %v601
        %604 = vrot.lane.b32.xlu0 %v602, 12
        %v605 = vpop.permute.xlu0 %604
        %v607 = vmul.f32 %v545, %v605
        %v608 = vmul.f32 %v546, %v605
        %611 = vrot.lane.b32.xlu0 %v607, 116
        %v612 = vpop.permute.xlu0 %611
        %613 = vrot.lane.b32.xlu0 %v608, 116
        %v614 = vpop.permute.xlu0 %613
        %v617 = vadd.f32 %v596, %v612
        %v618 = vadd.f32 %v597, %v614
        %v619 = vld [vmem:[#allocation7 + $0xe] sm:$0x1]
        %v620 = vlaneseq
        %v621 = vshrl.u32 %v620, 7
        %v622 = vsub.s32 0, %v621
        %v623 = vrot.slane %v619, %v622
        %625 = vrot.lane.b32.xlu0 %v623, 16
        %v626 = vpop.permute.xlu0 %625
        %v628 = vmul.f32 %v545, %v626
        %v629 = vmul.f32 %v546, %v626
        %632 = vrot.lane.b32.xlu0 %v628, 112
        %v633 = vpop.permute.xlu0 %632
        %634 = vrot.lane.b32.xlu0 %v629, 112
        %v635 = vpop.permute.xlu0 %634
        %v638 = vadd.f32 %v617, %v633
        %v639 = vadd.f32 %v618, %v635
        %v640 = vld [vmem:[#allocation2 + $0x3] sm:$0xff]
        %v641 = vld [vmem:[#allocation2 + $0xb] sm:$0xff]
        %v642 = vld [vmem:[#allocation7 + $0xf] sm:$0x1]
        %v643 = vlaneseq
        %v644 = vshrl.u32 %v643, 7
        %v645 = vsub.s32 0, %v644
        %v646 = vrot.slane %v642, %v645
        %v647 = vmul.f32 %v640, %v646
        %v648 = vmul.f32 %v641, %v646
        %v649 = vadd.f32 %v638, %v647
        %v650 = vadd.f32 %v639, %v648
        %v651 = vld [vmem:[#allocation7 + $0x10] sm:$0x1]
        %v652 = vlaneseq
        %v653 = vshrl.u32 %v652, 7
        %v654 = vsub.s32 0, %v653
        %v655 = vrot.slane %v651, %v654
        %657 = vrot.lane.b32.xlu0 %v655, 4
        %v658 = vpop.permute.xlu0 %657
        %v660 = vmul.f32 %v640, %v658
        %v661 = vmul.f32 %v641, %v658
        %664 = vrot.lane.b32.xlu0 %v660, 124
        %v665 = vpop.permute.xlu0 %664
        %666 = vrot.lane.b32.xlu0 %v661, 124
        %v667 = vpop.permute.xlu0 %666
        %v670 = vadd.f32 %v649, %v665
        %v671 = vadd.f32 %v650, %v667
        %v672 = vld [vmem:[#allocation7 + $0x11] sm:$0x1]
        %v673 = vlaneseq
        %v674 = vshrl.u32 %v673, 7
        %v675 = vsub.s32 0, %v674
        %v676 = vrot.slane %v672, %v675
        %678 = vrot.lane.b32.xlu0 %v676, 8
        %v679 = vpop.permute.xlu0 %678
        %v681 = vmul.f32 %v640, %v679
        %v682 = vmul.f32 %v641, %v679
        %685 = vrot.lane.b32.xlu0 %v681, 120
        %v686 = vpop.permute.xlu0 %685
        %687 = vrot.lane.b32.xlu0 %v682, 120
        %v688 = vpop.permute.xlu0 %687
        %v691 = vadd.f32 %v670, %v686
        %v692 = vadd.f32 %v671, %v688
        %v693 = vld [vmem:[#allocation7 + $0x12] sm:$0x1]
        %v694 = vlaneseq
        %v695 = vshrl.u32 %v694, 7
        %v696 = vsub.s32 0, %v695
        %v697 = vrot.slane %v693, %v696
        %699 = vrot.lane.b32.xlu0 %v697, 12
        %v700 = vpop.permute.xlu0 %699
        %v702 = vmul.f32 %v640, %v700
        %v703 = vmul.f32 %v641, %v700
        %706 = vrot.lane.b32.xlu0 %v702, 116
        %v707 = vpop.permute.xlu0 %706
        %708 = vrot.lane.b32.xlu0 %v703, 116
        %v709 = vpop.permute.xlu0 %708
        %v712 = vadd.f32 %v691, %v707
        %v713 = vadd.f32 %v692, %v709
        %v714 = vld [vmem:[#allocation7 + $0x13] sm:$0x1]
        %v715 = vlaneseq
        %v716 = vshrl.u32 %v715, 7
        %v717 = vsub.s32 0, %v716
        %v718 = vrot.slane %v714, %v717
        %720 = vrot.lane.b32.xlu0 %v718, 16
        %v721 = vpop.permute.xlu0 %720
        %v723 = vmul.f32 %v640, %v721
        %v724 = vmul.f32 %v641, %v721
        %727 = vrot.lane.b32.xlu0 %v723, 112
        %v728 = vpop.permute.xlu0 %727
        %729 = vrot.lane.b32.xlu0 %v724, 112
        %v730 = vpop.permute.xlu0 %729
        %v733 = vadd.f32 %v712, %v728
        %v734 = vadd.f32 %v713, %v730
        %v735 = vld [vmem:[#allocation2 + $0x4] sm:$0xff]
        %v736 = vld [vmem:[#allocation2 + $0xc] sm:$0xff]
        %v737 = vld [vmem:[#allocation7 + $0x14] sm:$0x1]
        %v738 = vlaneseq
        %v739 = vshrl.u32 %v738, 7
        %v740 = vsub.s32 0, %v739
        %v741 = vrot.slane %v737, %v740
        %v742 = vmul.f32 %v735, %v741
        %v743 = vmul.f32 %v736, %v741
        %v744 = vadd.f32 %v733, %v742
        %v745 = vadd.f32 %v734, %v743
        %v746 = vld [vmem:[#allocation7 + $0x15] sm:$0x1]
        %v747 = vlaneseq
        %v748 = vshrl.u32 %v747, 7
        %v749 = vsub.s32 0, %v748
        %v750 = vrot.slane %v746, %v749
        %752 = vrot.lane.b32.xlu0 %v750, 4
        %v753 = vpop.permute.xlu0 %752
        %v755 = vmul.f32 %v735, %v753
        %v756 = vmul.f32 %v736, %v753
        %759 = vrot.lane.b32.xlu0 %v755, 124
        %v760 = vpop.permute.xlu0 %759
        %761 = vrot.lane.b32.xlu0 %v756, 124
        %v762 = vpop.permute.xlu0 %761
        %v765 = vadd.f32 %v744, %v760
        %v766 = vadd.f32 %v745, %v762
        %v767 = vld [vmem:[#allocation7 + $0x16] sm:$0x1]
        %v768 = vlaneseq
        %v769 = vshrl.u32 %v768, 7
        %v770 = vsub.s32 0, %v769
        %v771 = vrot.slane %v767, %v770
        %773 = vrot.lane.b32.xlu0 %v771, 8
        %v774 = vpop.permute.xlu0 %773
        %v776 = vmul.f32 %v735, %v774
        %v777 = vmul.f32 %v736, %v774
        %780 = vrot.lane.b32.xlu0 %v776, 120
        %v781 = vpop.permute.xlu0 %780
        %782 = vrot.lane.b32.xlu0 %v777, 120
        %v783 = vpop.permute.xlu0 %782
        %v786 = vadd.f32 %v765, %v781
        %v787 = vadd.f32 %v766, %v783
        %v788 = vld [vmem:[#allocation7 + $0x17] sm:$0x1]
        %v789 = vlaneseq
        %v790 = vshrl.u32 %v789, 7
        %v791 = vsub.s32 0, %v790
        %v792 = vrot.slane %v788, %v791
        %794 = vrot.lane.b32.xlu0 %v792, 12
        %v795 = vpop.permute.xlu0 %794
        %v797 = vmul.f32 %v735, %v795
        %v798 = vmul.f32 %v736, %v795
        %801 = vrot.lane.b32.xlu0 %v797, 116
        %v802 = vpop.permute.xlu0 %801
        %803 = vrot.lane.b32.xlu0 %v798, 116
        %v804 = vpop.permute.xlu0 %803
        %v807 = vadd.f32 %v786, %v802
        %v808 = vadd.f32 %v787, %v804
        %v809 = vld [vmem:[#allocation7 + $0x18] sm:$0x1]
        %v810 = vlaneseq
        %v811 = vshrl.u32 %v810, 7
        %v812 = vsub.s32 0, %v811
        %v813 = vrot.slane %v809, %v812
        %815 = vrot.lane.b32.xlu0 %v813, 16
        %v816 = vpop.permute.xlu0 %815
        %v818 = vmul.f32 %v735, %v816
        %v819 = vmul.f32 %v736, %v816
        %822 = vrot.lane.b32.xlu0 %v818, 112
        %v823 = vpop.permute.xlu0 %822
        %824 = vrot.lane.b32.xlu0 %v819, 112
        %v825 = vpop.permute.xlu0 %824
        %v828 = vadd.f32 %v807, %v823
        %v829 = vadd.f32 %v808, %v825
        %830 = vst [vmem:[#allocation3] sm:$0xff] 0.0
        %831 = vst.msk [vmem:[#allocation3 + $0x8] sm:$0xff] %vm339, 0.0
        %832 = vst [vmem:[#allocation3 + $0x10] sm:$0x1] 0.0
        %vm833 = vcmask 57344
        %834 = vst.msk [vmem:[#allocation3 + $0x18] sm:$0x1] %vm833, 0.0
        %835 = vst [vmem:[#allocation3 + $0x30] sm:$0xfe] 0.0
        %vm836 = vcmask 64513
        %837 = vst.msk [vmem:[#allocation3 + $0x38] sm:$0xfe] %vm836, 0.0
        %838 = vst [vmem:[#allocation3 + $0x40] sm:$0x3] 0.0
        %vm839 = vcmask 58368
        %840 = vst.msk [vmem:[#allocation3 + $0x48] sm:$0x3] %vm839, 0.0
        %843 = vrot.lane.b32.xlu0 %v828, 36
        %v844 = vpop.permute.xlu0 %843
        %845 = vrot.lane.b32.xlu0 %v829, 36
        %v846 = vpop.permute.xlu0 %845
        %vm849 = vcmask 293888
        %v850 = vsel %vm849, 0.0, %v844
        %v851 = vsel %vm849, 0.0, %v846
        %vm852 = vcmask 818176
        %v853 = vsel %vm852, %v850, 0.0
        %v854 = vsel %vm852, %v851, 0.0
        %vm858 = vcmask 1040384
        %v859 = vrot.slane %v853, 7
        %v860 = vrot.slane 0.0, 7
        %v861 = vrot.slane %v854, 7
        %v862 = vsel %vm858, %v859, %v861
        %v863 = vsel %vm858, %v860, %v860
        %869 = vst [vmem:[#allocation3 + $0x10] sm:$0xfe] %v859
        %870 = vst.msk [vmem:[#allocation3 + $0x18] sm:$0xfe] %vm836, %v860
        %871 = vst [vmem:[#allocation3 + $0x20] sm:$0xff] %v862
        %872 = vst.msk [vmem:[#allocation3 + $0x28] sm:$0xff] %vm339, %v863
        %873 = vst [vmem:[#allocation3 + $0x30] sm:$0x1] %v861
        %874 = vst.msk [vmem:[#allocation3 + $0x38] sm:$0x1] %vm833, %v860
        %v875 = vld [vmem:[%s4] sm:$0x1]
        %v877 = vlaneseq
        %v878 = vshrl.u32 %v877, 7
        %v879 = vsub.s32 0, %v878
        %v880 = vrot.slane %v875, %v879
        %v882 = vld [vmem:[#allocation3] sm:$0xff]
        %v883 = vld [vmem:[#allocation3 + $0x10] sm:$0xff]
        %v884 = vld [vmem:[#allocation9] sm:$0x1]
        %v885 = vlaneseq
        %v886 = vshrl.u32 %v885, 7
        %v887 = vsub.s32 0, %v886
        %v888 = vrot.slane %v884, %v887
        %v889 = vmul.f32 %v882, %v888
        %v890 = vmul.f32 %v883, %v888
        %v891 = vadd.f32 %v880, %v889
        %v892 = vadd.f32 %v880, %v890
        %v893 = vld [vmem:[#allocation9 + $0x1] sm:$0x1]
        %v894 = vlaneseq
        %v895 = vshrl.u32 %v894, 7
        %v896 = vsub.s32 0, %v895
        %v897 = vrot.slane %v893, %v896
        %899 = vrot.lane.b32.xlu0 %v897, 12
        %v900 = vpop.permute.xlu0 %899
        %v902 = vmul.f32 %v882, %v900
        %v903 = vmul.f32 %v883, %v900
        %906 = vrot.lane.b32.xlu0 %v902, 116
        %v907 = vpop.permute.xlu0 %906
        %908 = vrot.lane.b32.xlu0 %v903, 116
        %v909 = vpop.permute.xlu0 %908
        %v912 = vadd.f32 %v891, %v907
        %v913 = vadd.f32 %v892, %v909
        %v914 = vld [vmem:[#allocation9 + $0x2] sm:$0x1]
        %v915 = vlaneseq
        %v916 = vshrl.u32 %v915, 7
        %v917 = vsub.s32 0, %v916
        %v918 = vrot.slane %v914, %v917
        %920 = vrot.lane.b32.xlu0 %v918, 24
        %v921 = vpop.permute.xlu0 %920
        %v923 = vmul.f32 %v882, %v921
        %v924 = vmul.f32 %v883, %v921
        %927 = vrot.lane.b32.xlu0 %v923, 104
        %v928 = vpop.permute.xlu0 %927
        %929 = vrot.lane.b32.xlu0 %v924, 104
        %v930 = vpop.permute.xlu0 %929
        %v933 = vadd.f32 %v912, %v928
        %v934 = vadd.f32 %v913, %v930
        %v935 = vld [vmem:[#allocation9 + $0x3] sm:$0x1]
        %v936 = vlaneseq
        %v937 = vshrl.u32 %v936, 7
        %v938 = vsub.s32 0, %v937
        %v939 = vrot.slane %v935, %v938
        %941 = vrot.lane.b32.xlu0 %v939, 36
        %v942 = vpop.permute.xlu0 %941
        %v944 = vmul.f32 %v882, %v942
        %v945 = vmul.f32 %v883, %v942
        %948 = vrot.lane.b32.xlu0 %v944, 92
        %v949 = vpop.permute.xlu0 %948
        %950 = vrot.lane.b32.xlu0 %v945, 92
        %v951 = vpop.permute.xlu0 %950
        %v954 = vadd.f32 %v933, %v949
        %v955 = vadd.f32 %v934, %v951
        %v956 = vld [vmem:[#allocation9 + $0x4] sm:$0x1]
        %v957 = vlaneseq
        %v958 = vshrl.u32 %v957, 7
        %v959 = vsub.s32 0, %v958
        %v960 = vrot.slane %v956, %v959
        %962 = vrot.lane.b32.xlu0 %v960, 48
        %v963 = vpop.permute.xlu0 %962
        %v965 = vmul.f32 %v882, %v963
        %v966 = vmul.f32 %v883, %v963
        %969 = vrot.lane.b32.xlu0 %v965, 80
        %v970 = vpop.permute.xlu0 %969
        %971 = vrot.lane.b32.xlu0 %v966, 80
        %v972 = vpop.permute.xlu0 %971
        %v975 = vadd.f32 %v954, %v970
        %v976 = vadd.f32 %v955, %v972
        %v977 = vld [vmem:[#allocation9 + $0x5] sm:$0x1]
        %v978 = vlaneseq
        %v979 = vshrl.u32 %v978, 7
        %v980 = vsub.s32 0, %v979
        %v981 = vrot.slane %v977, %v980
        %983 = vrot.lane.b32.xlu0 %v981, 60
        %v984 = vpop.permute.xlu0 %983
        %v986 = vmul.f32 %v882, %v984
        %v987 = vmul.f32 %v883, %v984
        %990 = vrot.lane.b32.xlu0 %v986, 68
        %v991 = vpop.permute.xlu0 %990
        %992 = vrot.lane.b32.xlu0 %v987, 68
        %v993 = vpop.permute.xlu0 %992
        %v996 = vadd.f32 %v975, %v991
        %v997 = vadd.f32 %v976, %v993
        %v998 = vld [vmem:[#allocation3 + $0x8] sm:$0xff]
        %v999 = vld [vmem:[#allocation3 + $0x18] sm:$0xff]
        %v1000 = vld [vmem:[#allocation9 + $0x6] sm:$0x1]
        %v1001 = vlaneseq
        %v1002 = vshrl.u32 %v1001, 7
        %v1003 = vsub.s32 0, %v1002
        %v1004 = vrot.slane %v1000, %v1003
        %1006 = vrot.lane.b32.xlu0 %v1004, 72
        %v1007 = vpop.permute.xlu0 %1006
        %v1009 = vmul.f32 %v882, %v1007
        %v1010 = vmul.f32 %v998, %v1007
        %v1011 = vmul.f32 %v883, %v1007
        %v1012 = vmul.f32 %v999, %v1007
        %1017 = vrot.lane.b32.xlu0 %v1009, 56
        %v1018 = vpop.permute.xlu0 %1017
        %1019 = vrot.lane.b32.xlu0 %v1010, 56
        %v1020 = vpop.permute.xlu0 %1019
        %1021 = vrot.lane.b32.xlu0 %v1011, 56
        %v1022 = vpop.permute.xlu0 %1021
        %1023 = vrot.lane.b32.xlu0 %v1012, 56
        %v1024 = vpop.permute.xlu0 %1023
        %vm1025 = vcmask 457728
        %v1026 = vsel %vm1025, %v1018, %v1020
        %v1027 = vsel %vm1025, %v1022, %v1024
        %v1030 = vadd.f32 %v996, %v1026
        %v1031 = vadd.f32 %v997, %v1027
        %v1032 = vld [vmem:[#allocation3] sm:$0xf8]
        %v1033 = vld [vmem:[#allocation3 + $0x20] sm:$0x7]
        %v1034 = vld [vmem:[#allocation9 + $0x7] sm:$0x1]
        %v1035 = vlaneseq
        %v1036 = vshrl.u32 %v1035, 7
        %v1037 = vsub.s32 0, %v1036
        %v1038 = vrot.slane %v1034, %v1037
        %v1039 = vmul.f32 %v1032, %v1038
        %v1040 = vmul.f32 %v883, %v1038
        %v1041 = vmul.f32 %v1033, %v1038
        %vm1045 = vcmask 1044480
        %v1046 = vrot.slane %v1039, 3
        %v1047 = vrot.slane %v1040, 3
        %v1048 = vsel %vm1045, %v1046, %v1047
        %v1049 = vrot.slane %v1041, 3
        %v1050 = vsel %vm1045, %v1047, %v1049
        %v1053 = vadd.f32 %v1030, %v1048
        %v1054 = vadd.f32 %v1031, %v1050
        %v1055 = vld [vmem:[#allocation9 + $0x8] sm:$0x1]
        %v1056 = vlaneseq
        %v1057 = vshrl.u32 %v1056, 7
        %v1058 = vsub.s32 0, %v1057
        %v1059 = vrot.slane %v1055, %v1058
        %1061 = vrot.lane.b32.xlu0 %v1059, 12
        %v1062 = vpop.permute.xlu0 %1061
        %v1064 = vmul.f32 %v1032, %v1062
        %v1065 = vmul.f32 %v883, %v1062
        %v1066 = vmul.f32 %v1033, %v1062
        %v1070 = vrot.slane %v1064, 3
        %v1071 = vrot.slane %v1065, 3
        %v1072 = vsel %vm1045, %v1070, %v1071
        %v1073 = vrot.slane %v1066, 3
        %v1074 = vsel %vm1045, %v1071, %v1073
        %1075 = vrot.lane.b32.xlu0 %v1072, 116
        %v1076 = vpop.permute.xlu0 %1075
        %1077 = vrot.lane.b32.xlu0 %v1074, 116
        %v1078 = vpop.permute.xlu0 %1077
        %v1081 = vadd.f32 %v1053, %v1076
        %v1082 = vadd.f32 %v1054, %v1078
        %v1083 = vld [vmem:[#allocation9 + $0x9] sm:$0x1]
        %v1084 = vlaneseq
        %v1085 = vshrl.u32 %v1084, 7
        %v1086 = vsub.s32 0, %v1085
        %v1087 = vrot.slane %v1083, %v1086
        %1089 = vrot.lane.b32.xlu0 %v1087, 24
        %v1090 = vpop.permute.xlu0 %1089
        %v1092 = vmul.f32 %v1032, %v1090
        %v1093 = vmul.f32 %v883, %v1090
        %v1094 = vmul.f32 %v1033, %v1090
        %v1098 = vrot.slane %v1092, 3
        %v1099 = vrot.slane %v1093, 3
        %v1100 = vsel %vm1045, %v1098, %v1099
        %v1101 = vrot.slane %v1094, 3
        %v1102 = vsel %vm1045, %v1099, %v1101
        %1103 = vrot.lane.b32.xlu0 %v1100, 104
        %v1104 = vpop.permute.xlu0 %1103
        %1105 = vrot.lane.b32.xlu0 %v1102, 104
        %v1106 = vpop.permute.xlu0 %1105
        %v1109 = vadd.f32 %v1081, %v1104
        %v1110 = vadd.f32 %v1082, %v1106
        %v1111 = vld [vmem:[#allocation9 + $0xa] sm:$0x1]
        %v1112 = vlaneseq
        %v1113 = vshrl.u32 %v1112, 7
        %v1114 = vsub.s32 0, %v1113
        %v1115 = vrot.slane %v1111, %v1114
        %1117 = vrot.lane.b32.xlu0 %v1115, 36
        %v1118 = vpop.permute.xlu0 %1117
        %v1120 = vmul.f32 %v1032, %v1118
        %v1121 = vmul.f32 %v883, %v1118
        %v1122 = vmul.f32 %v1033, %v1118
        %v1126 = vrot.slane %v1120, 3
        %v1127 = vrot.slane %v1121, 3
        %v1128 = vsel %vm1045, %v1126, %v1127
        %v1129 = vrot.slane %v1122, 3
        %v1130 = vsel %vm1045, %v1127, %v1129
        %1131 = vrot.lane.b32.xlu0 %v1128, 92
        %v1132 = vpop.permute.xlu0 %1131
        %1133 = vrot.lane.b32.xlu0 %v1130, 92
        %v1134 = vpop.permute.xlu0 %1133
        %v1137 = vadd.f32 %v1109, %v1132
        %v1138 = vadd.f32 %v1110, %v1134
        %v1139 = vld [vmem:[#allocation9 + $0xb] sm:$0x1]
        %v1140 = vlaneseq
        %v1141 = vshrl.u32 %v1140, 7
        %v1142 = vsub.s32 0, %v1141
        %v1143 = vrot.slane %v1139, %v1142
        %1145 = vrot.lane.b32.xlu0 %v1143, 48
        %v1146 = vpop.permute.xlu0 %1145
        %v1148 = vmul.f32 %v1032, %v1146
        %v1149 = vmul.f32 %v883, %v1146
        %v1150 = vmul.f32 %v1033, %v1146
        %v1154 = vrot.slane %v1148, 3
        %v1155 = vrot.slane %v1149, 3
        %v1156 = vsel %vm1045, %v1154, %v1155
        %v1157 = vrot.slane %v1150, 3
        %v1158 = vsel %vm1045, %v1155, %v1157
        %1159 = vrot.lane.b32.xlu0 %v1156, 80
        %v1160 = vpop.permute.xlu0 %1159
        %1161 = vrot.lane.b32.xlu0 %v1158, 80
        %v1162 = vpop.permute.xlu0 %1161
        %v1165 = vadd.f32 %v1137, %v1160
        %v1166 = vadd.f32 %v1138, %v1162
        %v1167 = vld [vmem:[#allocation9 + $0xc] sm:$0x1]
        %v1168 = vlaneseq
        %v1169 = vshrl.u32 %v1168, 7
        %v1170 = vsub.s32 0, %v1169
        %v1171 = vrot.slane %v1167, %v1170
        %1173 = vrot.lane.b32.xlu0 %v1171, 60
        %v1174 = vpop.permute.xlu0 %1173
        %v1176 = vmul.f32 %v1032, %v1174
        %v1177 = vmul.f32 %v883, %v1174
        %v1178 = vmul.f32 %v1033, %v1174
        %v1182 = vrot.slane %v1176, 3
        %v1183 = vrot.slane %v1177, 3
        %v1184 = vsel %vm1045, %v1182, %v1183
        %v1185 = vrot.slane %v1178, 3
        %v1186 = vsel %vm1045, %v1183, %v1185
        %1187 = vrot.lane.b32.xlu0 %v1184, 68
        %v1188 = vpop.permute.xlu0 %1187
        %1189 = vrot.lane.b32.xlu0 %v1186, 68
        %v1190 = vpop.permute.xlu0 %1189
        %v1193 = vadd.f32 %v1165, %v1188
        %v1194 = vadd.f32 %v1166, %v1190
        %v1195 = vld [vmem:[#allocation3 + $0x8] sm:$0xf8]
        %v1196 = vld [vmem:[#allocation3 + $0x28] sm:$0x7]
        %v1197 = vld [vmem:[#allocation9 + $0xd] sm:$0x1]
        %v1198 = vlaneseq
        %v1199 = vshrl.u32 %v1198, 7
        %v1200 = vsub.s32 0, %v1199
        %v1201 = vrot.slane %v1197, %v1200
        %1203 = vrot.lane.b32.xlu0 %v1201, 72
        %v1204 = vpop.permute.xlu0 %1203
        %v1206 = vmul.f32 %v1032, %v1204
        %v1207 = vmul.f32 %v1195, %v1204
        %v1208 = vmul.f32 %v883, %v1204
        %v1209 = vmul.f32 %v999, %v1204
        %v1210 = vmul.f32 %v1033, %v1204
        %v1211 = vmul.f32 %v1196, %v1204
        %v1218 = vrot.slane %v1206, 3
        %v1219 = vrot.slane %v1208, 3
        %v1220 = vsel %vm1045, %v1218, %v1219
        %v1221 = vrot.slane %v1207, 3
        %v1222 = vrot.slane %v1209, 3
        %v1223 = vsel %vm1045, %v1221, %v1222
        %v1224 = vrot.slane %v1210, 3
        %v1225 = vsel %vm1045, %v1219, %v1224
        %v1226 = vrot.slane %v1211, 3
        %v1227 = vsel %vm1045, %v1222, %v1226
        %1228 = vrot.lane.b32.xlu0 %v1220, 56
        %v1229 = vpop.permute.xlu0 %1228
        %1230 = vrot.lane.b32.xlu0 %v1223, 56
        %v1231 = vpop.permute.xlu0 %1230
        %1232 = vrot.lane.b32.xlu0 %v1225, 56
        %v1233 = vpop.permute.xlu0 %1232
        %1234 = vrot.lane.b32.xlu0 %v1227, 56
        %v1235 = vpop.permute.xlu0 %1234
        %v1236 = vsel %vm1025, %v1229, %v1231
        %v1237 = vsel %vm1025, %v1233, %v1235
        %v1240 = vadd.f32 %v1193, %v1236
        %v1241 = vadd.f32 %v1194, %v1237
        %v1242 = vld [vmem:[#allocation3] sm:$0xc0]
        %v1243 = vld [vmem:[#allocation3 + $0x20] sm:$0x3f]
        %v1244 = vld [vmem:[#allocation9 + $0xe] sm:$0x1]
        %v1245 = vlaneseq
        %v1246 = vshrl.u32 %v1245, 7
        %v1247 = vsub.s32 0, %v1246
        %v1248 = vrot.slane %v1244, %v1247
        %v1249 = vmul.f32 %v1242, %v1248
        %v1250 = vmul.f32 %v883, %v1248
        %v1251 = vmul.f32 %v1243, %v1248
        %vm1255 = vcmask 1041408
        %v1256 = vrot.slane %v1249, 6
        %v1257 = vrot.slane %v1250, 6
        %v1258 = vsel %vm1255, %v1256, %v1257
        %v1259 = vrot.slane %v1251, 6
        %v1260 = vsel %vm1255, %v1257, %v1259
        %v1263 = vadd.f32 %v1240, %v1258
        %v1264 = vadd.f32 %v1241, %v1260
        %v1265 = vld [vmem:[#allocation9 + $0xf] sm:$0x1]
        %v1266 = vlaneseq
        %v1267 = vshrl.u32 %v1266, 7
        %v1268 = vsub.s32 0, %v1267
        %v1269 = vrot.slane %v1265, %v1268
        %1271 = vrot.lane.b32.xlu0 %v1269, 12
        %v1272 = vpop.permute.xlu0 %1271
        %v1274 = vmul.f32 %v1242, %v1272
        %v1275 = vmul.f32 %v883, %v1272
        %v1276 = vmul.f32 %v1243, %v1272
        %v1280 = vrot.slane %v1274, 6
        %v1281 = vrot.slane %v1275, 6
        %v1282 = vsel %vm1255, %v1280, %v1281
        %v1283 = vrot.slane %v1276, 6
        %v1284 = vsel %vm1255, %v1281, %v1283
        %1285 = vrot.lane.b32.xlu0 %v1282, 116
        %v1286 = vpop.permute.xlu0 %1285
        %1287 = vrot.lane.b32.xlu0 %v1284, 116
        %v1288 = vpop.permute.xlu0 %1287
        %v1291 = vadd.f32 %v1263, %v1286
        %v1292 = vadd.f32 %v1264, %v1288
        %v1293 = vld [vmem:[#allocation9 + $0x10] sm:$0x1]
        %v1294 = vlaneseq
        %v1295 = vshrl.u32 %v1294, 7
        %v1296 = vsub.s32 0, %v1295
        %v1297 = vrot.slane %v1293, %v1296
        %1299 = vrot.lane.b32.xlu0 %v1297, 24
        %v1300 = vpop.permute.xlu0 %1299
        %v1302 = vmul.f32 %v1242, %v1300
        %v1303 = vmul.f32 %v883, %v1300
        %v1304 = vmul.f32 %v1243, %v1300
        %v1308 = vrot.slane %v1302, 6
        %v1309 = vrot.slane %v1303, 6
        %v1310 = vsel %vm1255, %v1308, %v1309
        %v1311 = vrot.slane %v1304, 6
        %v1312 = vsel %vm1255, %v1309, %v1311
        %1313 = vrot.lane.b32.xlu0 %v1310, 104
        %v1314 = vpop.permute.xlu0 %1313
        %1315 = vrot.lane.b32.xlu0 %v1312, 104
        %v1316 = vpop.permute.xlu0 %1315
        %v1319 = vadd.f32 %v1291, %v1314
        %v1320 = vadd.f32 %v1292, %v1316
        %v1321 = vld [vmem:[#allocation9 + $0x11] sm:$0x1]
        %v1322 = vlaneseq
        %v1323 = vshrl.u32 %v1322, 7
        %v1324 = vsub.s32 0, %v1323
        %v1325 = vrot.slane %v1321, %v1324
        %1327 = vrot.lane.b32.xlu0 %v1325, 36
        %v1328 = vpop.permute.xlu0 %1327
        %v1330 = vmul.f32 %v1242, %v1328
        %v1331 = vmul.f32 %v883, %v1328
        %v1332 = vmul.f32 %v1243, %v1328
        %v1336 = vrot.slane %v1330, 6
        %v1337 = vrot.slane %v1331, 6
        %v1338 = vsel %vm1255, %v1336, %v1337
        %v1339 = vrot.slane %v1332, 6
        %v1340 = vsel %vm1255, %v1337, %v1339
        %1341 = vrot.lane.b32.xlu0 %v1338, 92
        %v1342 = vpop.permute.xlu0 %1341
        %1343 = vrot.lane.b32.xlu0 %v1340, 92
        %v1344 = vpop.permute.xlu0 %1343
        %v1347 = vadd.f32 %v1319, %v1342
        %v1348 = vadd.f32 %v1320, %v1344
        %v1349 = vld [vmem:[#allocation9 + $0x12] sm:$0x1]
        %v1350 = vlaneseq
        %v1351 = vshrl.u32 %v1350, 7
        %v1352 = vsub.s32 0, %v1351
        %v1353 = vrot.slane %v1349, %v1352
        %1355 = vrot.lane.b32.xlu0 %v1353, 48
        %v1356 = vpop.permute.xlu0 %1355
        %v1358 = vmul.f32 %v1242, %v1356
        %v1359 = vmul.f32 %v883, %v1356
        %v1360 = vmul.f32 %v1243, %v1356
        %v1364 = vrot.slane %v1358, 6
        %v1365 = vrot.slane %v1359, 6
        %v1366 = vsel %vm1255, %v1364, %v1365
        %v1367 = vrot.slane %v1360, 6
        %v1368 = vsel %vm1255, %v1365, %v1367
        %1369 = vrot.lane.b32.xlu0 %v1366, 80
        %v1370 = vpop.permute.xlu0 %1369
        %1371 = vrot.lane.b32.xlu0 %v1368, 80
        %v1372 = vpop.permute.xlu0 %1371
        %v1375 = vadd.f32 %v1347, %v1370
        %v1376 = vadd.f32 %v1348, %v1372
        %v1377 = vld [vmem:[#allocation9 + $0x13] sm:$0x1]
        %v1378 = vlaneseq
        %v1379 = vshrl.u32 %v1378, 7
        %v1380 = vsub.s32 0, %v1379
        %v1381 = vrot.slane %v1377, %v1380
        %1383 = vrot.lane.b32.xlu0 %v1381, 60
        %v1384 = vpop.permute.xlu0 %1383
        %v1386 = vmul.f32 %v1242, %v1384
        %v1387 = vmul.f32 %v883, %v1384
        %v1388 = vmul.f32 %v1243, %v1384
        %v1392 = vrot.slane %v1386, 6
        %v1393 = vrot.slane %v1387, 6
        %v1394 = vsel %vm1255, %v1392, %v1393
        %v1395 = vrot.slane %v1388, 6
        %v1396 = vsel %vm1255, %v1393, %v1395
        %1397 = vrot.lane.b32.xlu0 %v1394, 68
        %v1398 = vpop.permute.xlu0 %1397
        %1399 = vrot.lane.b32.xlu0 %v1396, 68
        %v1400 = vpop.permute.xlu0 %1399
        %v1403 = vadd.f32 %v1375, %v1398
        %v1404 = vadd.f32 %v1376, %v1400
        %v1405 = vld [vmem:[#allocation3 + $0x8] sm:$0xc0]
        %v1406 = vld [vmem:[#allocation3 + $0x28] sm:$0x3f]
        %v1407 = vld [vmem:[#allocation9 + $0x14] sm:$0x1]
        %v1408 = vlaneseq
        %v1409 = vshrl.u32 %v1408, 7
        %v1410 = vsub.s32 0, %v1409
        %v1411 = vrot.slane %v1407, %v1410
        %1413 = vrot.lane.b32.xlu0 %v1411, 72
        %v1414 = vpop.permute.xlu0 %1413
        %v1416 = vmul.f32 %v1242, %v1414
        %v1417 = vmul.f32 %v1405, %v1414
        %v1418 = vmul.f32 %v883, %v1414
        %v1419 = vmul.f32 %v999, %v1414
        %v1420 = vmul.f32 %v1243, %v1414
        %v1421 = vmul.f32 %v1406, %v1414
        %v1428 = vrot.slane %v1416, 6
        %v1429 = vrot.slane %v1418, 6
        %v1430 = vsel %vm1255, %v1428, %v1429
        %v1431 = vrot.slane %v1417, 6
        %v1432 = vrot.slane %v1419, 6
        %v1433 = vsel %vm1255, %v1431, %v1432
        %v1434 = vrot.slane %v1420, 6
        %v1435 = vsel %vm1255, %v1429, %v1434
        %v1436 = vrot.slane %v1421, 6
        %v1437 = vsel %vm1255, %v1432, %v1436
        %1438 = vrot.lane.b32.xlu0 %v1430, 56
        %v1439 = vpop.permute.xlu0 %1438
        %1440 = vrot.lane.b32.xlu0 %v1433, 56
        %v1441 = vpop.permute.xlu0 %1440
        %1442 = vrot.lane.b32.xlu0 %v1435, 56
        %v1443 = vpop.permute.xlu0 %1442
        %1444 = vrot.lane.b32.xlu0 %v1437, 56
        %v1445 = vpop.permute.xlu0 %1444
        %v1446 = vsel %vm1025, %v1439, %v1441
        %v1447 = vsel %vm1025, %v1443, %v1445
        %v1450 = vadd.f32 %v1403, %v1446
        %v1451 = vadd.f32 %v1404, %v1447
        %v1452 = vld [vmem:[#allocation3 + $0x10] sm:$0xfe]
        %v1453 = vld [vmem:[#allocation3 + $0x20] sm:$0xff]
        %v1454 = vld [vmem:[#allocation3 + $0x30] sm:$0x1]
        %v1455 = vld [vmem:[#allocation9 + $0x15] sm:$0x1]
        %v1456 = vlaneseq
        %v1457 = vshrl.u32 %v1456, 7
        %v1458 = vsub.s32 0, %v1457
        %v1459 = vrot.slane %v1455, %v1458
        %v1460 = vmul.f32 %v1452, %v1459
        %v1461 = vmul.f32 %v1453, %v1459
        %v1462 = vmul.f32 %v1454, %v1459
        %vm1466 = vcmask 1046528
        %v1467 = vrot.slane %v1460, 1
        %v1468 = vrot.slane %v1461, 1
        %v1469 = vsel %vm1466, %v1467, %v1468
        %v1470 = vrot.slane %v1462, 1
        %v1471 = vsel %vm1466, %v1468, %v1470
        %v1474 = vadd.f32 %v1450, %v1469
        %v1475 = vadd.f32 %v1451, %v1471
        %v1476 = vld [vmem:[#allocation9 + $0x16] sm:$0x1]
        %v1477 = vlaneseq
        %v1478 = vshrl.u32 %v1477, 7
        %v1479 = vsub.s32 0, %v1478
        %v1480 = vrot.slane %v1476, %v1479
        %1482 = vrot.lane.b32.xlu0 %v1480, 12
        %v1483 = vpop.permute.xlu0 %1482
        %v1485 = vmul.f32 %v1452, %v1483
        %v1486 = vmul.f32 %v1453, %v1483
        %v1487 = vmul.f32 %v1454, %v1483
        %v1491 = vrot.slane %v1485, 1
        %v1492 = vrot.slane %v1486, 1
        %v1493 = vsel %vm1466, %v1491, %v1492
        %v1494 = vrot.slane %v1487, 1
        %v1495 = vsel %vm1466, %v1492, %v1494
        %1496 = vrot.lane.b32.xlu0 %v1493, 116
        %v1497 = vpop.permute.xlu0 %1496
        %1498 = vrot.lane.b32.xlu0 %v1495, 116
        %v1499 = vpop.permute.xlu0 %1498
        %v1502 = vadd.f32 %v1474, %v1497
        %v1503 = vadd.f32 %v1475, %v1499
        %v1504 = vld [vmem:[#allocation9 + $0x17] sm:$0x1]
        %v1505 = vlaneseq
        %v1506 = vshrl.u32 %v1505, 7
        %v1507 = vsub.s32 0, %v1506
        %v1508 = vrot.slane %v1504, %v1507
        %1510 = vrot.lane.b32.xlu0 %v1508, 24
        %v1511 = vpop.permute.xlu0 %1510
        %v1513 = vmul.f32 %v1452, %v1511
        %v1514 = vmul.f32 %v1453, %v1511
        %v1515 = vmul.f32 %v1454, %v1511
        %v1519 = vrot.slane %v1513, 1
        %v1520 = vrot.slane %v1514, 1
        %v1521 = vsel %vm1466, %v1519, %v1520
        %v1522 = vrot.slane %v1515, 1
        %v1523 = vsel %vm1466, %v1520, %v1522
        %1524 = vrot.lane.b32.xlu0 %v1521, 104
        %v1525 = vpop.permute.xlu0 %1524
        %1526 = vrot.lane.b32.xlu0 %v1523, 104
        %v1527 = vpop.permute.xlu0 %1526
        %v1530 = vadd.f32 %v1502, %v1525
        %v1531 = vadd.f32 %v1503, %v1527
        %v1532 = vld [vmem:[#allocation9 + $0x18] sm:$0x1]
        %v1533 = vlaneseq
        %v1534 = vshrl.u32 %v1533, 7
        %v1535 = vsub.s32 0, %v1534
        %v1536 = vrot.slane %v1532, %v1535
        %1538 = vrot.lane.b32.xlu0 %v1536, 36
        %v1539 = vpop.permute.xlu0 %1538
        %v1541 = vmul.f32 %v1452, %v1539
        %v1542 = vmul.f32 %v1453, %v1539
        %v1543 = vmul.f32 %v1454, %v1539
        %v1547 = vrot.slane %v1541, 1
        %v1548 = vrot.slane %v1542, 1
        %v1549 = vsel %vm1466, %v1547, %v1548
        %v1550 = vrot.slane %v1543, 1
        %v1551 = vsel %vm1466, %v1548, %v1550
        %1552 = vrot.lane.b32.xlu0 %v1549, 92
        %v1553 = vpop.permute.xlu0 %1552
        %1554 = vrot.lane.b32.xlu0 %v1551, 92
        %v1555 = vpop.permute.xlu0 %1554
        %v1558 = vadd.f32 %v1530, %v1553
        %v1559 = vadd.f32 %v1531, %v1555
        %v1560 = vld [vmem:[#allocation9 + $0x19] sm:$0x1]
        %v1561 = vlaneseq
        %v1562 = vshrl.u32 %v1561, 7
        %v1563 = vsub.s32 0, %v1562
        %v1564 = vrot.slane %v1560, %v1563
        %1566 = vrot.lane.b32.xlu0 %v1564, 48
        %v1567 = vpop.permute.xlu0 %1566
        %v1569 = vmul.f32 %v1452, %v1567
        %v1570 = vmul.f32 %v1453, %v1567
        %v1571 = vmul.f32 %v1454, %v1567
        %v1575 = vrot.slane %v1569, 1
        %v1576 = vrot.slane %v1570, 1
        %v1577 = vsel %vm1466, %v1575, %v1576
        %v1578 = vrot.slane %v1571, 1
        %v1579 = vsel %vm1466, %v1576, %v1578
        %1580 = vrot.lane.b32.xlu0 %v1577, 80
        %v1581 = vpop.permute.xlu0 %1580
        %1582 = vrot.lane.b32.xlu0 %v1579, 80
        %v1583 = vpop.permute.xlu0 %1582
        %v1586 = vadd.f32 %v1558, %v1581
        %v1587 = vadd.f32 %v1559, %v1583
        %v1588 = vld [vmem:[#allocation9 + $0x1a] sm:$0x1]
        %v1589 = vlaneseq
        %v1590 = vshrl.u32 %v1589, 7
        %v1591 = vsub.s32 0, %v1590
        %v1592 = vrot.slane %v1588, %v1591
        %1594 = vrot.lane.b32.xlu0 %v1592, 60
        %v1595 = vpop.permute.xlu0 %1594
        %v1597 = vmul.f32 %v1452, %v1595
        %v1598 = vmul.f32 %v1453, %v1595
        %v1599 = vmul.f32 %v1454, %v1595
        %v1603 = vrot.slane %v1597, 1
        %v1604 = vrot.slane %v1598, 1
        %v1605 = vsel %vm1466, %v1603, %v1604
        %v1606 = vrot.slane %v1599, 1
        %v1607 = vsel %vm1466, %v1604, %v1606
        %1608 = vrot.lane.b32.xlu0 %v1605, 68
        %v1609 = vpop.permute.xlu0 %1608
        %1610 = vrot.lane.b32.xlu0 %v1607, 68
        %v1611 = vpop.permute.xlu0 %1610
        %v1614 = vadd.f32 %v1586, %v1609
        %v1615 = vadd.f32 %v1587, %v1611
        %v1616 = vld [vmem:[#allocation3 + $0x18] sm:$0xfe]
        %v1617 = vld [vmem:[#allocation3 + $0x28] sm:$0xff]
        %v1618 = vld [vmem:[#allocation3 + $0x38] sm:$0x1]
        %v1619 = vld [vmem:[#allocation9 + $0x1b] sm:$0x1]
        %v1620 = vlaneseq
        %v1621 = vshrl.u32 %v1620, 7
        %v1622 = vsub.s32 0, %v1621
        %v1623 = vrot.slane %v1619, %v1622
        %1625 = vrot.lane.b32.xlu0 %v1623, 72
        %v1626 = vpop.permute.xlu0 %1625
        %v1628 = vmul.f32 %v1452, %v1626
        %v1629 = vmul.f32 %v1616, %v1626
        %v1630 = vmul.f32 %v1453, %v1626
        %v1631 = vmul.f32 %v1617, %v1626
        %v1632 = vmul.f32 %v1454, %v1626
        %v1633 = vmul.f32 %v1618, %v1626
        %v1640 = vrot.slane %v1628, 1
        %v1641 = vrot.slane %v1630, 1
        %v1642 = vsel %vm1466, %v1640, %v1641
        %v1643 = vrot.slane %v1629, 1
        %v1644 = vrot.slane %v1631, 1
        %v1645 = vsel %vm1466, %v1643, %v1644
        %v1646 = vrot.slane %v1632, 1
        %v1647 = vsel %vm1466, %v1641, %v1646
        %v1648 = vrot.slane %v1633, 1
        %v1649 = vsel %vm1466, %v1644, %v1648
        %1650 = vrot.lane.b32.xlu0 %v1642, 56
        %v1651 = vpop.permute.xlu0 %1650
        %1652 = vrot.lane.b32.xlu0 %v1645, 56
        %v1653 = vpop.permute.xlu0 %1652
        %1654 = vrot.lane.b32.xlu0 %v1647, 56
        %v1655 = vpop.permute.xlu0 %1654
        %1656 = vrot.lane.b32.xlu0 %v1649, 56
        %v1657 = vpop.permute.xlu0 %1656
        %v1658 = vsel %vm1025, %v1651, %v1653
        %v1659 = vsel %vm1025, %v1655, %v1657
        %v1662 = vadd.f32 %v1614, %v1658
        %v1663 = vadd.f32 %v1615, %v1659
        %v1664 = vld [vmem:[#allocation3 + $0x10] sm:$0xf0]
        %v1665 = vld [vmem:[#allocation3 + $0x30] sm:$0xf]
        %v1666 = vld [vmem:[#allocation9 + $0x1c] sm:$0x1]
        %v1667 = vlaneseq
        %v1668 = vshrl.u32 %v1667, 7
        %v1669 = vsub.s32 0, %v1668
        %v1670 = vrot.slane %v1666, %v1669
        %v1671 = vmul.f32 %v1664, %v1670
        %v1672 = vmul.f32 %v1453, %v1670
        %v1673 = vmul.f32 %v1665, %v1670
        %vm1677 = vcmask 1043456
        %v1678 = vrot.slane %v1671, 4
        %v1679 = vrot.slane %v1672, 4
        %v1680 = vsel %vm1677, %v1678, %v1679
        %v1681 = vrot.slane %v1673, 4
        %v1682 = vsel %vm1677, %v1679, %v1681
        %v1685 = vadd.f32 %v1662, %v1680
        %v1686 = vadd.f32 %v1663, %v1682
        %v1687 = vld [vmem:[#allocation9 + $0x1d] sm:$0x1]
        %v1688 = vlaneseq
        %v1689 = vshrl.u32 %v1688, 7
        %v1690 = vsub.s32 0, %v1689
        %v1691 = vrot.slane %v1687, %v1690
        %1693 = vrot.lane.b32.xlu0 %v1691, 12
        %v1694 = vpop.permute.xlu0 %1693
        %v1696 = vmul.f32 %v1664, %v1694
        %v1697 = vmul.f32 %v1453, %v1694
        %v1698 = vmul.f32 %v1665, %v1694
        %v1702 = vrot.slane %v1696, 4
        %v1703 = vrot.slane %v1697, 4
        %v1704 = vsel %vm1677, %v1702, %v1703
        %v1705 = vrot.slane %v1698, 4
        %v1706 = vsel %vm1677, %v1703, %v1705
        %1707 = vrot.lane.b32.xlu0 %v1704, 116
        %v1708 = vpop.permute.xlu0 %1707
        %1709 = vrot.lane.b32.xlu0 %v1706, 116
        %v1710 = vpop.permute.xlu0 %1709
        %v1713 = vadd.f32 %v1685, %v1708
        %v1714 = vadd.f32 %v1686, %v1710
        %v1715 = vld [vmem:[#allocation9 + $0x1e] sm:$0x1]
        %v1716 = vlaneseq
        %v1717 = vshrl.u32 %v1716, 7
        %v1718 = vsub.s32 0, %v1717
        %v1719 = vrot.slane %v1715, %v1718
        %1721 = vrot.lane.b32.xlu0 %v1719, 24
        %v1722 = vpop.permute.xlu0 %1721
        %v1724 = vmul.f32 %v1664, %v1722
        %v1725 = vmul.f32 %v1453, %v1722
        %v1726 = vmul.f32 %v1665, %v1722
        %v1730 = vrot.slane %v1724, 4
        %v1731 = vrot.slane %v1725, 4
        %v1732 = vsel %vm1677, %v1730, %v1731
        %v1733 = vrot.slane %v1726, 4
        %v1734 = vsel %vm1677, %v1731, %v1733
        %1735 = vrot.lane.b32.xlu0 %v1732, 104
        %v1736 = vpop.permute.xlu0 %1735
        %1737 = vrot.lane.b32.xlu0 %v1734, 104
        %v1738 = vpop.permute.xlu0 %1737
        %v1741 = vadd.f32 %v1713, %v1736
        %v1742 = vadd.f32 %v1714, %v1738
        %v1743 = vld [vmem:[#allocation9 + $0x1f] sm:$0x1]
        %v1744 = vlaneseq
        %v1745 = vshrl.u32 %v1744, 7
        %v1746 = vsub.s32 0, %v1745
        %v1747 = vrot.slane %v1743, %v1746
        %1749 = vrot.lane.b32.xlu0 %v1747, 36
        %v1750 = vpop.permute.xlu0 %1749
        %v1752 = vmul.f32 %v1664, %v1750
        %v1753 = vmul.f32 %v1453, %v1750
        %v1754 = vmul.f32 %v1665, %v1750
        %v1758 = vrot.slane %v1752, 4
        %v1759 = vrot.slane %v1753, 4
        %v1760 = vsel %vm1677, %v1758, %v1759
        %v1761 = vrot.slane %v1754, 4
        %v1762 = vsel %vm1677, %v1759, %v1761
        %1763 = vrot.lane.b32.xlu0 %v1760, 92
        %v1764 = vpop.permute.xlu0 %1763
        %1765 = vrot.lane.b32.xlu0 %v1762, 92
        %v1766 = vpop.permute.xlu0 %1765
        %v1769 = vadd.f32 %v1741, %v1764
        %v1770 = vadd.f32 %v1742, %v1766
        %v1771 = vld [vmem:[#allocation9 + $0x20] sm:$0x1]
        %v1772 = vlaneseq
        %v1773 = vshrl.u32 %v1772, 7
        %v1774 = vsub.s32 0, %v1773
        %v1775 = vrot.slane %v1771, %v1774
        %1777 = vrot.lane.b32.xlu0 %v1775, 48
        %v1778 = vpop.permute.xlu0 %1777
        %v1780 = vmul.f32 %v1664, %v1778
        %v1781 = vmul.f32 %v1453, %v1778
        %v1782 = vmul.f32 %v1665, %v1778
        %v1786 = vrot.slane %v1780, 4
        %v1787 = vrot.slane %v1781, 4
        %v1788 = vsel %vm1677, %v1786, %v1787
        %v1789 = vrot.slane %v1782, 4
        %v1790 = vsel %vm1677, %v1787, %v1789
        %1791 = vrot.lane.b32.xlu0 %v1788, 80
        %v1792 = vpop.permute.xlu0 %1791
        %1793 = vrot.lane.b32.xlu0 %v1790, 80
        %v1794 = vpop.permute.xlu0 %1793
        %v1797 = vadd.f32 %v1769, %v1792
        %v1798 = vadd.f32 %v1770, %v1794
        %v1799 = vld [vmem:[#allocation9 + $0x21] sm:$0x1]
        %v1800 = vlaneseq
        %v1801 = vshrl.u32 %v1800, 7
        %v1802 = vsub.s32 0, %v1801
        %v1803 = vrot.slane %v1799, %v1802
        %1805 = vrot.lane.b32.xlu0 %v1803, 60
        %v1806 = vpop.permute.xlu0 %1805
        %v1808 = vmul.f32 %v1664, %v1806
        %v1809 = vmul.f32 %v1453, %v1806
        %v1810 = vmul.f32 %v1665, %v1806
        %v1814 = vrot.slane %v1808, 4
        %v1815 = vrot.slane %v1809, 4
        %v1816 = vsel %vm1677, %v1814, %v1815
        %v1817 = vrot.slane %v1810, 4
        %v1818 = vsel %vm1677, %v1815, %v1817
        %1819 = vrot.lane.b32.xlu0 %v1816, 68
        %v1820 = vpop.permute.xlu0 %1819
        %1821 = vrot.lane.b32.xlu0 %v1818, 68
        %v1822 = vpop.permute.xlu0 %1821
        %v1825 = vadd.f32 %v1797, %v1820
        %v1826 = vadd.f32 %v1798, %v1822
        %v1827 = vld [vmem:[#allocation3 + $0x18] sm:$0xf0]
        %v1828 = vld [vmem:[#allocation3 + $0x38] sm:$0xf]
        %v1829 = vld [vmem:[#allocation9 + $0x22] sm:$0x1]
        %v1830 = vlaneseq
        %v1831 = vshrl.u32 %v1830, 7
        %v1832 = vsub.s32 0, %v1831
        %v1833 = vrot.slane %v1829, %v1832
        %1835 = vrot.lane.b32.xlu0 %v1833, 72
        %v1836 = vpop.permute.xlu0 %1835
        %v1838 = vmul.f32 %v1664, %v1836
        %v1839 = vmul.f32 %v1827, %v1836
        %v1840 = vmul.f32 %v1453, %v1836
        %v1841 = vmul.f32 %v1617, %v1836
        %v1842 = vmul.f32 %v1665, %v1836
        %v1843 = vmul.f32 %v1828, %v1836
        %v1850 = vrot.slane %v1838, 4
        %v1851 = vrot.slane %v1840, 4
        %v1852 = vsel %vm1677, %v1850, %v1851
        %v1853 = vrot.slane %v1839, 4
        %v1854 = vrot.slane %v1841, 4
        %v1855 = vsel %vm1677, %v1853, %v1854
        %v1856 = vrot.slane %v1842, 4
        %v1857 = vsel %vm1677, %v1851, %v1856
        %v1858 = vrot.slane %v1843, 4
        %v1859 = vsel %vm1677, %v1854, %v1858
        %1860 = vrot.lane.b32.xlu0 %v1852, 56
        %v1861 = vpop.permute.xlu0 %1860
        %1862 = vrot.lane.b32.xlu0 %v1855, 56
        %v1863 = vpop.permute.xlu0 %1862
        %1864 = vrot.lane.b32.xlu0 %v1857, 56
        %v1865 = vpop.permute.xlu0 %1864
        %1866 = vrot.lane.b32.xlu0 %v1859, 56
        %v1867 = vpop.permute.xlu0 %1866
        %v1868 = vsel %vm1025, %v1861, %v1863
        %v1869 = vsel %vm1025, %v1865, %v1867
        %v1872 = vadd.f32 %v1825, %v1868
        %v1873 = vadd.f32 %v1826, %v1869
        %v1874 = vld [vmem:[#allocation3 + $0x10] sm:$0x80]
        %v1875 = vld [vmem:[#allocation3 + $0x30] sm:$0x7f]
        %v1876 = vld [vmem:[#allocation9 + $0x23] sm:$0x1]
        %v1877 = vlaneseq
        %v1878 = vshrl.u32 %v1877, 7
        %v1879 = vsub.s32 0, %v1878
        %v1880 = vrot.slane %v1876, %v1879
        %v1881 = vmul.f32 %v1874, %v1880
        %v1882 = vmul.f32 %v1453, %v1880
        %v1883 = vmul.f32 %v1875, %v1880
        %v1887 = vrot.slane %v1881, 7
        %v1888 = vrot.slane %v1882, 7
        %v1889 = vsel %vm858, %v1887, %v1888
        %v1890 = vrot.slane %v1883, 7
        %v1891 = vsel %vm858, %v1888, %v1890
        %v1894 = vadd.f32 %v1872, %v1889
        %v1895 = vadd.f32 %v1873, %v1891
        %v1896 = vld [vmem:[#allocation9 + $0x24] sm:$0x1]
        %v1897 = vlaneseq
        %v1898 = vshrl.u32 %v1897, 7
        %v1899 = vsub.s32 0, %v1898
        %v1900 = vrot.slane %v1896, %v1899
        %1902 = vrot.lane.b32.xlu0 %v1900, 12
        %v1903 = vpop.permute.xlu0 %1902
        %v1905 = vmul.f32 %v1874, %v1903
        %v1906 = vmul.f32 %v1453, %v1903
        %v1907 = vmul.f32 %v1875, %v1903
        %v1911 = vrot.slane %v1905, 7
        %v1912 = vrot.slane %v1906, 7
        %v1913 = vsel %vm858, %v1911, %v1912
        %v1914 = vrot.slane %v1907, 7
        %v1915 = vsel %vm858, %v1912, %v1914
        %1916 = vrot.lane.b32.xlu0 %v1913, 116
        %v1917 = vpop.permute.xlu0 %1916
        %1918 = vrot.lane.b32.xlu0 %v1915, 116
        %v1919 = vpop.permute.xlu0 %1918
        %v1922 = vadd.f32 %v1894, %v1917
        %v1923 = vadd.f32 %v1895, %v1919
        %v1924 = vld [vmem:[#allocation9 + $0x25] sm:$0x1]
        %v1925 = vlaneseq
        %v1926 = vshrl.u32 %v1925, 7
        %v1927 = vsub.s32 0, %v1926
        %v1928 = vrot.slane %v1924, %v1927
        %1930 = vrot.lane.b32.xlu0 %v1928, 24
        %v1931 = vpop.permute.xlu0 %1930
        %v1933 = vmul.f32 %v1874, %v1931
        %v1934 = vmul.f32 %v1453, %v1931
        %v1935 = vmul.f32 %v1875, %v1931
        %v1939 = vrot.slane %v1933, 7
        %v1940 = vrot.slane %v1934, 7
        %v1941 = vsel %vm858, %v1939, %v1940
        %v1942 = vrot.slane %v1935, 7
        %v1943 = vsel %vm858, %v1940, %v1942
        %1944 = vrot.lane.b32.xlu0 %v1941, 104
        %v1945 = vpop.permute.xlu0 %1944
        %1946 = vrot.lane.b32.xlu0 %v1943, 104
        %v1947 = vpop.permute.xlu0 %1946
        %v1950 = vadd.f32 %v1922, %v1945
        %v1951 = vadd.f32 %v1923, %v1947
        %v1952 = vld [vmem:[#allocation9 + $0x26] sm:$0x1]
        %v1953 = vlaneseq
        %v1954 = vshrl.u32 %v1953, 7
        %v1955 = vsub.s32 0, %v1954
        %v1956 = vrot.slane %v1952, %v1955
        %1958 = vrot.lane.b32.xlu0 %v1956, 36
        %v1959 = vpop.permute.xlu0 %1958
        %v1961 = vmul.f32 %v1874, %v1959
        %v1962 = vmul.f32 %v1453, %v1959
        %v1963 = vmul.f32 %v1875, %v1959
        %v1967 = vrot.slane %v1961, 7
        %v1968 = vrot.slane %v1962, 7
        %v1969 = vsel %vm858, %v1967, %v1968
        %v1970 = vrot.slane %v1963, 7
        %v1971 = vsel %vm858, %v1968, %v1970
        %1972 = vrot.lane.b32.xlu0 %v1969, 92
        %v1973 = vpop.permute.xlu0 %1972
        %1974 = vrot.lane.b32.xlu0 %v1971, 92
        %v1975 = vpop.permute.xlu0 %1974
        %v1978 = vadd.f32 %v1950, %v1973
        %v1979 = vadd.f32 %v1951, %v1975
        %v1980 = vld [vmem:[#allocation9 + $0x27] sm:$0x1]
        %v1981 = vlaneseq
        %v1982 = vshrl.u32 %v1981, 7
        %v1983 = vsub.s32 0, %v1982
        %v1984 = vrot.slane %v1980, %v1983
        %1986 = vrot.lane.b32.xlu0 %v1984, 48
        %v1987 = vpop.permute.xlu0 %1986
        %v1989 = vmul.f32 %v1874, %v1987
        %v1990 = vmul.f32 %v1453, %v1987
        %v1991 = vmul.f32 %v1875, %v1987
        %v1995 = vrot.slane %v1989, 7
        %v1996 = vrot.slane %v1990, 7
        %v1997 = vsel %vm858, %v1995, %v1996
        %v1998 = vrot.slane %v1991, 7
        %v1999 = vsel %vm858, %v1996, %v1998
        %2000 = vrot.lane.b32.xlu0 %v1997, 80
        %v2001 = vpop.permute.xlu0 %2000
        %2002 = vrot.lane.b32.xlu0 %v1999, 80
        %v2003 = vpop.permute.xlu0 %2002
        %v2006 = vadd.f32 %v1978, %v2001
        %v2007 = vadd.f32 %v1979, %v2003
        %v2008 = vld [vmem:[#allocation9 + $0x28] sm:$0x1]
        %v2009 = vlaneseq
        %v2010 = vshrl.u32 %v2009, 7
        %v2011 = vsub.s32 0, %v2010
        %v2012 = vrot.slane %v2008, %v2011
        %2014 = vrot.lane.b32.xlu0 %v2012, 60
        %v2015 = vpop.permute.xlu0 %2014
        %v2017 = vmul.f32 %v1874, %v2015
        %v2018 = vmul.f32 %v1453, %v2015
        %v2019 = vmul.f32 %v1875, %v2015
        %v2023 = vrot.slane %v2017, 7
        %v2024 = vrot.slane %v2018, 7
        %v2025 = vsel %vm858, %v2023, %v2024
        %v2026 = vrot.slane %v2019, 7
        %v2027 = vsel %vm858, %v2024, %v2026
        %2028 = vrot.lane.b32.xlu0 %v2025, 68
        %v2029 = vpop.permute.xlu0 %2028
        %2030 = vrot.lane.b32.xlu0 %v2027, 68
        %v2031 = vpop.permute.xlu0 %2030
        %v2034 = vadd.f32 %v2006, %v2029
        %v2035 = vadd.f32 %v2007, %v2031
        %v2036 = vld [vmem:[#allocation3 + $0x18] sm:$0x80]
        %v2037 = vld [vmem:[#allocation3 + $0x38] sm:$0x7f]
        %v2038 = vld [vmem:[#allocation9 + $0x29] sm:$0x1]
        %v2039 = vlaneseq
        %v2040 = vshrl.u32 %v2039, 7
        %v2041 = vsub.s32 0, %v2040
        %v2042 = vrot.slane %v2038, %v2041
        %2044 = vrot.lane.b32.xlu0 %v2042, 72
        %v2045 = vpop.permute.xlu0 %2044
        %v2047 = vmul.f32 %v1874, %v2045
        %v2048 = vmul.f32 %v2036, %v2045
        %v2049 = vmul.f32 %v1453, %v2045
        %v2050 = vmul.f32 %v1617, %v2045
        %v2051 = vmul.f32 %v1875, %v2045
        %v2052 = vmul.f32 %v2037, %v2045
        %v2059 = vrot.slane %v2047, 7
        %v2060 = vrot.slane %v2049, 7
        %v2061 = vsel %vm858, %v2059, %v2060
        %v2062 = vrot.slane %v2048, 7
        %v2063 = vrot.slane %v2050, 7
        %v2064 = vsel %vm858, %v2062, %v2063
        %v2065 = vrot.slane %v2051, 7
        %v2066 = vsel %vm858, %v2060, %v2065
        %v2067 = vrot.slane %v2052, 7
        %v2068 = vsel %vm858, %v2063, %v2067
        %2069 = vrot.lane.b32.xlu0 %v2061, 56
        %v2070 = vpop.permute.xlu0 %2069
        %2071 = vrot.lane.b32.xlu0 %v2064, 56
        %v2072 = vpop.permute.xlu0 %2071
        %2073 = vrot.lane.b32.xlu0 %v2066, 56
        %v2074 = vpop.permute.xlu0 %2073
        %2075 = vrot.lane.b32.xlu0 %v2068, 56
        %v2076 = vpop.permute.xlu0 %2075
        %v2077 = vsel %vm1025, %v2070, %v2072
        %v2078 = vsel %vm1025, %v2074, %v2076
        %v2081 = vadd.f32 %v2034, %v2077
        %v2082 = vadd.f32 %v2035, %v2078
        %v2083 = vld [vmem:[#allocation3 + $0x20] sm:$0xfc]
        %v2084 = vld [vmem:[#allocation3 + $0x30] sm:$0xff]
        %v2085 = vld [vmem:[#allocation3 + $0x40] sm:$0x3]
        %v2086 = vld [vmem:[#allocation9 + $0x2a] sm:$0x1]
        %v2087 = vlaneseq
        %v2088 = vshrl.u32 %v2087, 7
        %v2089 = vsub.s32 0, %v2088
        %v2090 = vrot.slane %v2086, %v2089
        %v2091 = vmul.f32 %v2083, %v2090
        %v2092 = vmul.f32 %v2084, %v2090
        %v2093 = vmul.f32 %v2085, %v2090
        %vm2097 = vcmask 1045504
        %v2098 = vrot.slane %v2091, 2
        %v2099 = vrot.slane %v2092, 2
        %v2100 = vsel %vm2097, %v2098, %v2099
        %v2101 = vrot.slane %v2093, 2
        %v2102 = vsel %vm2097, %v2099, %v2101
        %v2105 = vadd.f32 %v2081, %v2100
        %v2106 = vadd.f32 %v2082, %v2102
        %v2107 = vld [vmem:[#allocation9 + $0x2b] sm:$0x1]
        %v2108 = vlaneseq
        %v2109 = vshrl.u32 %v2108, 7
        %v2110 = vsub.s32 0, %v2109
        %v2111 = vrot.slane %v2107, %v2110
        %2113 = vrot.lane.b32.xlu0 %v2111, 12
        %v2114 = vpop.permute.xlu0 %2113
        %v2116 = vmul.f32 %v2083, %v2114
        %v2117 = vmul.f32 %v2084, %v2114
        %v2118 = vmul.f32 %v2085, %v2114
        %v2122 = vrot.slane %v2116, 2
        %v2123 = vrot.slane %v2117, 2
        %v2124 = vsel %vm2097, %v2122, %v2123
        %v2125 = vrot.slane %v2118, 2
        %v2126 = vsel %vm2097, %v2123, %v2125
        %2127 = vrot.lane.b32.xlu0 %v2124, 116
        %v2128 = vpop.permute.xlu0 %2127
        %2129 = vrot.lane.b32.xlu0 %v2126, 116
        %v2130 = vpop.permute.xlu0 %2129
        %v2133 = vadd.f32 %v2105, %v2128
        %v2134 = vadd.f32 %v2106, %v2130
        %v2135 = vld [vmem:[#allocation9 + $0x2c] sm:$0x1]
        %v2136 = vlaneseq
        %v2137 = vshrl.u32 %v2136, 7
        %v2138 = vsub.s32 0, %v2137
        %v2139 = vrot.slane %v2135, %v2138
        %2141 = vrot.lane.b32.xlu0 %v2139, 24
        %v2142 = vpop.permute.xlu0 %2141
        %v2144 = vmul.f32 %v2083, %v2142
        %v2145 = vmul.f32 %v2084, %v2142
        %v2146 = vmul.f32 %v2085, %v2142
        %v2150 = vrot.slane %v2144, 2
        %v2151 = vrot.slane %v2145, 2
        %v2152 = vsel %vm2097, %v2150, %v2151
        %v2153 = vrot.slane %v2146, 2
        %v2154 = vsel %vm2097, %v2151, %v2153
        %2155 = vrot.lane.b32.xlu0 %v2152, 104
        %v2156 = vpop.permute.xlu0 %2155
        %2157 = vrot.lane.b32.xlu0 %v2154, 104
        %v2158 = vpop.permute.xlu0 %2157
        %v2161 = vadd.f32 %v2133, %v2156
        %v2162 = vadd.f32 %v2134, %v2158
        %v2163 = vld [vmem:[#allocation9 + $0x2d] sm:$0x1]
        %v2164 = vlaneseq
        %v2165 = vshrl.u32 %v2164, 7
        %v2166 = vsub.s32 0, %v2165
        %v2167 = vrot.slane %v2163, %v2166
        %2169 = vrot.lane.b32.xlu0 %v2167, 36
        %v2170 = vpop.permute.xlu0 %2169
        %v2172 = vmul.f32 %v2083, %v2170
        %v2173 = vmul.f32 %v2084, %v2170
        %v2174 = vmul.f32 %v2085, %v2170
        %v2178 = vrot.slane %v2172, 2
        %v2179 = vrot.slane %v2173, 2
        %v2180 = vsel %vm2097, %v2178, %v2179
        %v2181 = vrot.slane %v2174, 2
        %v2182 = vsel %vm2097, %v2179, %v2181
        %2183 = vrot.lane.b32.xlu0 %v2180, 92
        %v2184 = vpop.permute.xlu0 %2183
        %2185 = vrot.lane.b32.xlu0 %v2182, 92
        %v2186 = vpop.permute.xlu0 %2185
        %v2189 = vadd.f32 %v2161, %v2184
        %v2190 = vadd.f32 %v2162, %v2186
        %v2191 = vld [vmem:[#allocation9 + $0x2e] sm:$0x1]
        %v2192 = vlaneseq
        %v2193 = vshrl.u32 %v2192, 7
        %v2194 = vsub.s32 0, %v2193
        %v2195 = vrot.slane %v2191, %v2194
        %2197 = vrot.lane.b32.xlu0 %v2195, 48
        %v2198 = vpop.permute.xlu0 %2197
        %v2200 = vmul.f32 %v2083, %v2198
        %v2201 = vmul.f32 %v2084, %v2198
        %v2202 = vmul.f32 %v2085, %v2198
        %v2206 = vrot.slane %v2200, 2
        %v2207 = vrot.slane %v2201, 2
        %v2208 = vsel %vm2097, %v2206, %v2207
        %v2209 = vrot.slane %v2202, 2
        %v2210 = vsel %vm2097, %v2207, %v2209
        %2211 = vrot.lane.b32.xlu0 %v2208, 80
        %v2212 = vpop.permute.xlu0 %2211
        %2213 = vrot.lane.b32.xlu0 %v2210, 80
        %v2214 = vpop.permute.xlu0 %2213
        %v2217 = vadd.f32 %v2189, %v2212
        %v2218 = vadd.f32 %v2190, %v2214
        %v2219 = vld [vmem:[#allocation9 + $0x2f] sm:$0x1]
        %v2220 = vlaneseq
        %v2221 = vshrl.u32 %v2220, 7
        %v2222 = vsub.s32 0, %v2221
        %v2223 = vrot.slane %v2219, %v2222
        %2225 = vrot.lane.b32.xlu0 %v2223, 60
        %v2226 = vpop.permute.xlu0 %2225
        %v2228 = vmul.f32 %v2083, %v2226
        %v2229 = vmul.f32 %v2084, %v2226
        %v2230 = vmul.f32 %v2085, %v2226
        %v2234 = vrot.slane %v2228, 2
        %v2235 = vrot.slane %v2229, 2
        %v2236 = vsel %vm2097, %v2234, %v2235
        %v2237 = vrot.slane %v2230, 2
        %v2238 = vsel %vm2097, %v2235, %v2237
        %2239 = vrot.lane.b32.xlu0 %v2236, 68
        %v2240 = vpop.permute.xlu0 %2239
        %2241 = vrot.lane.b32.xlu0 %v2238, 68
        %v2242 = vpop.permute.xlu0 %2241
        %v2245 = vadd.f32 %v2217, %v2240
        %v2246 = vadd.f32 %v2218, %v2242
        %v2247 = vld [vmem:[#allocation3 + $0x28] sm:$0xfc]
        %v2248 = vld [vmem:[#allocation3 + $0x38] sm:$0xff]
        %v2249 = vld [vmem:[#allocation3 + $0x48] sm:$0x3]
        %v2250 = vld [vmem:[#allocation9 + $0x30] sm:$0x1]
        %v2251 = vlaneseq
        %v2252 = vshrl.u32 %v2251, 7
        %v2253 = vsub.s32 0, %v2252
        %v2254 = vrot.slane %v2250, %v2253
        %2256 = vrot.lane.b32.xlu0 %v2254, 72
        %v2257 = vpop.permute.xlu0 %2256
        %v2259 = vmul.f32 %v2083, %v2257
        %v2260 = vmul.f32 %v2247, %v2257
        %v2261 = vmul.f32 %v2084, %v2257
        %v2262 = vmul.f32 %v2248, %v2257
        %v2263 = vmul.f32 %v2085, %v2257
        %v2264 = vmul.f32 %v2249, %v2257
        %v2271 = vrot.slane %v2259, 2
        %v2272 = vrot.slane %v2261, 2
        %v2273 = vsel %vm2097, %v2271, %v2272
        %v2274 = vrot.slane %v2260, 2
        %v2275 = vrot.slane %v2262, 2
        %v2276 = vsel %vm2097, %v2274, %v2275
        %v2277 = vrot.slane %v2263, 2
        %v2278 = vsel %vm2097, %v2272, %v2277
        %v2279 = vrot.slane %v2264, 2
        %v2280 = vsel %vm2097, %v2275, %v2279
        %2281 = vrot.lane.b32.xlu0 %v2273, 56
        %v2282 = vpop.permute.xlu0 %2281
        %2283 = vrot.lane.b32.xlu0 %v2276, 56
        %v2284 = vpop.permute.xlu0 %2283
        %2285 = vrot.lane.b32.xlu0 %v2278, 56
        %v2286 = vpop.permute.xlu0 %2285
        %2287 = vrot.lane.b32.xlu0 %v2280, 56
        %v2288 = vpop.permute.xlu0 %2287
        %v2289 = vsel %vm1025, %v2282, %v2284
        %v2290 = vsel %vm1025, %v2286, %v2288
        %v2293 = vadd.f32 %v2245, %v2289
        %v2294 = vadd.f32 %v2246, %v2290
        %2297 = vrot.lane.b32.xlu0 %v2293, 4
        %v2298 = vpop.permute.xlu0 %2297
        %2299 = vrot.lane.b32.xlu0 %v2294, 4
        %v2300 = vpop.permute.xlu0 %2299
        %vm2303 = vcmask 31744
        %v2304 = vsel %vm2303, 0.0, %v2298
        %v2305 = vsel %vm2303, 0.0, %v2300
        %vm2306 = vcmask 556032
        %v2307 = vsel %vm2306, %v2304, 0.0
        %v2308 = vsel %vm2306, %v2305, 0.0
        %v2309 = vld [vmem:[%s6] sm:$0x1]
        %v2311 = vlaneseq
        %v2312 = vshrl.u32 %v2311, 7
        %v2313 = vsub.s32 0, %v2312
        %v2314 = vrot.slane %v2309, %v2313
        %v2316 = vld [vmem:[%s5] sm:$0x1]
        %v2317 = vlaneseq
        %v2318 = vshrl.u32 %v2317, 7
        %v2319 = vsub.s32 0, %v2318
        %v2320 = vrot.slane %v2316, %v2319
        %2322 = vrot.lane.b32.xlu0 %v2320, 1
        %v2323 = vpop.permute.xlu0 %2322
        %v2325 = vmul.f32 %v2307, %v2323
        %v2326 = vmul.f32 %v2308, %v2323
        %2329 = vrot.lane.b32.xlu0 %v2325, 127
        %v2330 = vpop.permute.xlu0 %2329
        %2331 = vrot.lane.b32.xlu0 %v2326, 127
        %v2332 = vpop.permute.xlu0 %2331
        %v2335 = vadd.f32 %v2314, %v2330
        %v2336 = vadd.f32 %v2314, %v2332
        %v2337 = vld [vmem:[%s5 + $0x1] sm:$0x1]
        %v2338 = vlaneseq
        %v2339 = vshrl.u32 %v2338, 7
        %v2340 = vsub.s32 0, %v2339
        %v2341 = vrot.slane %v2337, %v2340
        %2343 = vrot.lane.b32.xlu0 %v2341, 2
        %v2344 = vpop.permute.xlu0 %2343
        %v2346 = vmul.f32 %v2307, %v2344
        %v2347 = vmul.f32 %v2308, %v2344
        %2350 = vrot.lane.b32.xlu0 %v2346, 126
        %v2351 = vpop.permute.xlu0 %2350
        %2352 = vrot.lane.b32.xlu0 %v2347, 126
        %v2353 = vpop.permute.xlu0 %2352
        %v2356 = vadd.f32 %v2335, %v2351
        %v2357 = vadd.f32 %v2336, %v2353
        %v2358 = vld [vmem:[%s5 + $0x2] sm:$0x1]
        %v2359 = vlaneseq
        %v2360 = vshrl.u32 %v2359, 7
        %v2361 = vsub.s32 0, %v2360
        %v2362 = vrot.slane %v2358, %v2361
        %2364 = vrot.lane.b32.xlu0 %v2362, 3
        %v2365 = vpop.permute.xlu0 %2364
        %v2367 = vmul.f32 %v2307, %v2365
        %v2368 = vmul.f32 %v2308, %v2365
        %2371 = vrot.lane.b32.xlu0 %v2367, 125
        %v2372 = vpop.permute.xlu0 %2371
        %2373 = vrot.lane.b32.xlu0 %v2368, 125
        %v2374 = vpop.permute.xlu0 %2373
        %v2377 = vadd.f32 %v2356, %v2372
        %v2378 = vadd.f32 %v2357, %v2374
        %v2379 = vld [vmem:[%s5 + $0x3] sm:$0x1]
        %v2380 = vlaneseq
        %v2381 = vshrl.u32 %v2380, 7
        %v2382 = vsub.s32 0, %v2381
        %v2383 = vrot.slane %v2379, %v2382
        %2385 = vrot.lane.b32.xlu0 %v2383, 4
        %v2386 = vpop.permute.xlu0 %2385
        %v2388 = vmul.f32 %v2307, %v2386
        %v2389 = vmul.f32 %v2308, %v2386
        %2392 = vrot.lane.b32.xlu0 %v2388, 124
        %v2393 = vpop.permute.xlu0 %2392
        %2394 = vrot.lane.b32.xlu0 %v2389, 124
        %v2395 = vpop.permute.xlu0 %2394
        %v2398 = vadd.f32 %v2377, %v2393
        %v2399 = vadd.f32 %v2378, %v2395
        %v2400 = vld [vmem:[%s5 + $0x4] sm:$0x1]
        %v2401 = vlaneseq
        %v2402 = vshrl.u32 %v2401, 7
        %v2403 = vsub.s32 0, %v2402
        %v2404 = vrot.slane %v2400, %v2403
        %2406 = vrot.lane.b32.xlu0 %v2404, 5
        %v2407 = vpop.permute.xlu0 %2406
        %v2409 = vmul.f32 %v2307, %v2407
        %v2410 = vmul.f32 %v2308, %v2407
        %2413 = vrot.lane.b32.xlu0 %v2409, 123
        %v2414 = vpop.permute.xlu0 %2413
        %2415 = vrot.lane.b32.xlu0 %v2410, 123
        %v2416 = vpop.permute.xlu0 %2415
        %v2419 = vadd.f32 %v2398, %v2414
        %v2420 = vadd.f32 %v2399, %v2416
        %v2421 = vld [vmem:[%s5 + $0x5] sm:$0x1]
        %v2422 = vlaneseq
        %v2423 = vshrl.u32 %v2422, 7
        %v2424 = vsub.s32 0, %v2423
        %v2425 = vrot.slane %v2421, %v2424
        %2427 = vrot.lane.b32.xlu0 %v2425, 6
        %v2428 = vpop.permute.xlu0 %2427
        %v2430 = vmul.f32 %v2307, %v2428
        %v2431 = vmul.f32 %v2308, %v2428
        %2434 = vrot.lane.b32.xlu0 %v2430, 122
        %v2435 = vpop.permute.xlu0 %2434
        %2436 = vrot.lane.b32.xlu0 %v2431, 122
        %v2437 = vpop.permute.xlu0 %2436
        %v2440 = vadd.f32 %v2419, %v2435
        %v2441 = vadd.f32 %v2420, %v2437
        %v2442 = vld [vmem:[%s5 + $0x6] sm:$0x1]
        %v2443 = vlaneseq
        %v2444 = vshrl.u32 %v2443, 7
        %v2445 = vsub.s32 0, %v2444
        %v2446 = vrot.slane %v2442, %v2445
        %2448 = vrot.lane.b32.xlu0 %v2446, 7
        %v2449 = vpop.permute.xlu0 %2448
        %v2451 = vmul.f32 %v2307, %v2449
        %v2452 = vmul.f32 %v2308, %v2449
        %2455 = vrot.lane.b32.xlu0 %v2451, 121
        %v2456 = vpop.permute.xlu0 %2455
        %2457 = vrot.lane.b32.xlu0 %v2452, 121
        %v2458 = vpop.permute.xlu0 %2457
        %v2461 = vadd.f32 %v2440, %v2456
        %v2462 = vadd.f32 %v2441, %v2458
        %v2463 = vmul.f32 %v326, %v2461
        %v2464 = vmul.f32 %v327, %v2462
        %v2465 = vadd.f32 %v2463, %v326
        %v2466 = vadd.f32 %v2464, %v327
        %vm2467 = vcmask 523264
        %2468 = vst.msk [vmem:[%s325] sm:$0xff] %vm2467, %v2465
        %2469 = vst.msk [vmem:[%s325 + $0x8] sm:$0xff] %vm2467, %v2466
        %s2470 = sand.u32 %s185, 1
        %s2471 = scalar_lea.sflag [#allocation6], %s2470
        %s2472 = sand.u32 %s185, 1
        %s2473 = smul.addr %s2472, 16
        %s2474 = scalar_lea.vmem [#allocation10], %s2473
        // Predicated region
        $region61: #{tpu_custom_call.1} parent=47 // pred_check
          %p2475 = pneg %p195
        $region62: #{tpu_custom_call.1} parent=47 // pred_check_branch
          %2477 = sbr.rel (%p2475) target = $region64
        $region63: #{tpu_custom_call.1} parent=47 // pred_region
          %s2479 = ssub.s32 256, 256
          %2480 = vsyncadd %s2471, %s2479
          %s2481 = smul.addr %s25, 2
          %s2482 = smul.addr %s2481, 128
          %s2483 = scalar_lea.hbm %s7, %s2482
          %s2484 = sshll.u32 %s2474, 4
          %s2485 = int_to_ptr.vmem [resolvable:$true] %s2484
          %2490 = dma.vmem_to_hbm [thread:$0]  %s2485, 256, %s2483, %s2471, 128, 128, 8
        $region64: #{tpu_custom_call.1} parent=47 // pred_fallthru
          _
      $region48: #{tpu_custom_call.1} parent=5 // pred_fallthru
        _
      %p2491 = scmp.le.s32.totalorder 2, %s20
      // Predicated region
      $region65: #{tpu_custom_call.1} parent=5 // pred_check
        %p2492 = pneg %p2491
      $region66: #{tpu_custom_call.1} parent=5 // pred_check_branch
        %2494 = sbr.rel (%p2492) target = $region68
      $region67: #{tpu_custom_call.1} parent=5 // pred_region
        %s2495 = ssub.s32 %s20, 2
        // Predicated region
        $region69: #{tpu_custom_call.1} parent=67 // pred_check
          %p2496 = pneg %p201
        $region70: #{tpu_custom_call.1} parent=67 // pred_check_branch
          %2498 = sbr.rel (%p2496) target = $region72
        $region71: #{tpu_custom_call.1} parent=67 // pred_region
          %s2499 = sand.u32 %s186, 1
          %s2500 = scalar_lea.sflag [#allocation6], %s2499
          %s2501 = sand.u32 %s186, 1
          %s2502 = smul.addr %s2501, 16
          %s2503 = scalar_lea.vmem [#allocation10], %s2502
          %2504 = dma.done %s2500, 256
        $region72: #{tpu_custom_call.1} parent=67 // pred_fallthru
          _
      $region68: #{tpu_custom_call.1} parent=5 // pred_fallthru
        _
    $region6: #{tpu_custom_call.1} parent=1 // loop_footer
      %s24 = sadd.s32 1, %s20
    $region7: #{tpu_custom_call.1} parent=1 // loop_footer_branch
      %19 = sbr.rel target = $region3
    $region8: #{tpu_custom_call.1} parent=1 // loop_exit
      _
    %2505 = vsyncpa [#allocation5], 1
    %s2506 = scalar_lea.sflag [#allocation5], 1
    %2507 = vsyncpa %s2506, 1
    %2508 = vsyncpa [#allocation8], 1
    %2509 = vsyncpa [#allocation6], 1
    %s2510 = scalar_lea.sflag [#allocation6], 1
    %2511 = vsyncpa %s2510, 1

</llo_original>
